<compile_context>
chip_gen: v5e
topology: v5e:2x2
jax: 0.10.0
libtpu: 0.0.40
codegen_flags: <defaults>
</compile_context>

<pallas_src>
import functools

import jax
import jax.numpy as jnp
from jax import lax
from jax.experimental import pallas as pl
from jax.experimental.pallas import tpu as pltpu

KH = KW = 5      # conv kernel size
PAD = 2          # conv padding
_CHAN_UNROLL = 4  # channels combined in vregs per VMEM accumulator update


# --------------------------------------------------------------------------
# Small helpers (host side)
# --------------------------------------------------------------------------
def _vmem_limit_bytes():
    """VMEM budget for pallas_call: ~75% of physical, conservative fallback."""
    cap = 0
    try:
        cap = int(pltpu.get_tpu_info().vmem_capacity_bytes)
    except Exception:
        cap = 0
    if cap <= 0:
        cap = 64 << 20          # conservative: v7x physical VMEM per TensorCore
    return max(32 << 20, (cap * 3) // 4)


def _largest_divisor_leq(n, cap):
    cap = int(max(1, min(n, cap)))
    for d in range(cap, 0, -1):
        if n % d == 0:
            return d
    return 1


# --------------------------------------------------------------------------
# In-kernel helpers (shared between the fused and two-pass kernels)
# --------------------------------------------------------------------------
def _tree_reduce(vals, op):
    vals = list(vals)
    while len(vals) > 1:
        nxt = [op(vals[i], vals[i + 1]) for i in range(0, len(vals) - 1, 2)]
        if len(vals) % 2:
            nxt.append(vals[-1])
        vals = nxt
    return vals[0]


def _zero_halo(pad_sc, H, W):
    """Zero only the halo strips of the (2, H+4, W+4) padded conv input."""
    hp, wp = H + 2 * PAD, W + 2 * PAD
    for c in range(2):
        pad_sc[c, :PAD, :] = jnp.zeros((PAD, wp), jnp.float32)
        pad_sc[c, PAD + H:, :] = jnp.zeros((PAD, wp), jnp.float32)
        pad_sc[c, :, :PAD] = jnp.zeros((hp, PAD), jnp.float32)
        pad_sc[c, :, PAD + W:] = jnp.zeros((hp, PAD), jnp.float32)


def _accumulate_channels(x_ref, sum_sc, max_sc):
    """sum_sc += sum_c x, max_sc = max(max_sc, max_c x) over x_ref's channels.

    Unrolled by _CHAN_UNROLL: the partial sum/max of a chunk is built in
    vregs and the VMEM accumulators are updated once per chunk (cuts the
    scratch stores 4x; vst is the first slot to saturate on v7x / v5e).
    """
    c_t = x_ref.shape[0]
    unroll = min(_CHAN_UNROLL, c_t)
    n_chunks, rem = divmod(c_t, unroll)

    if n_chunks > 0:
        def chunk_body(i, carry):
            base = i * unroll
            xs = [x_ref[base + u].astype(jnp.float32) for u in range(unroll)]
            sum_sc[...] = sum_sc[...] + _tree_reduce(xs, lambda a, b: a + b)
            max_sc[...] = jnp.maximum(max_sc[...], _tree_reduce(xs, jnp.maximum))
            return carry
        # Trip count is a compile-time constant; unroll short loops for LLO.
        lax.fori_loop(0, n_chunks, chunk_body, 0, unroll=(n_chunks <= 8))

    for u in range(rem):                      # static remainder channels
        xc = x_ref[n_chunks * unroll + u].astype(jnp.float32)
        sum_sc[...] = sum_sc[...] + xc
        max_sc[...] = jnp.maximum(max_sc[...], xc)


def _conv5x5(pad_sc, w_ref, b_ref, H, W):
    """5x5, 2->1 channel conv of the padded scratch as 50 shifted MACs.

    Lane-direction (W) shifts hoisted out of the tap loop; one accumulator per
    input channel keeps the add chains independent.  Runs once per batch.
    """
    acc = [jnp.zeros((H, W), jnp.float32) for _ in range(2)]
    for c in range(2):
        for j in range(KW):
            col = pad_sc[c, :, j:j + W]                    # (H + 2*PAD, W)
            for i in range(KH):
                wv = w_ref[c * KH * KW + i * KW + j]
                acc[c] = acc[c] + wv * col[i:i + H, :]
    return acc[0] + acc[1] + b_ref[0]


# --------------------------------------------------------------------------
# Fused kernel: whole batch of x resident in VMEM (1x read + 1x write of x)
# --------------------------------------------------------------------------
def _fused_kernel(w_ref, b_ref, x_ref, o_ref, sum_sc, max_sc, pad_sc):
    # w_ref : SMEM (50,) conv weights, (in_ch, kh, kw) order; avg taps /C.
    # b_ref : SMEM (1,) conv bias.
    # x_ref : VMEM (C, H, W)  current batch of x (batch dim squeezed).
    # o_ref : VMEM (C, H, W)  output.
    C, H, W = x_ref.shape

    # Halo zeroed every grid step: cheap, and safe under megacore "parallel"
    # partitioning of the batch axis (each core fully initializes its scratch).
    _zero_halo(pad_sc, H, W)
    sum_sc[...] = jnp.zeros_like(sum_sc)
    max_sc[...] = jnp.full_like(max_sc, -jnp.inf)

    _accumulate_channels(x_ref, sum_sc, max_sc)

    pad_sc[0, PAD:PAD + H, PAD:PAD + W] = sum_sc[...]
    pad_sc[1, PAD:PAD + H, PAD:PAD + W] = max_sc[...]

    # Reuse sum_sc to hold the (H, W) attention map.
    sum_sc[...] = jax.nn.sigmoid(_conv5x5(pad_sc, w_ref, b_ref, H, W))

    # Scale x (still resident in VMEM) by the attention map, chunked over
    # channels so the map is loaded once per chunk.
    unroll = min(_CHAN_UNROLL, C)
    n_chunks, rem = divmod(C, unroll)
    if n_chunks > 0:
        def scale_chunk(i, carry):
            base = i * unroll
            sm = sum_sc[...]
            for u in range(unroll):
                o_ref[base + u] = (x_ref[base + u].astype(jnp.float32)
                                   * sm).astype(o_ref.dtype)
            return carry
        lax.fori_loop(0, n_chunks, scale_chunk, 0, unroll=(n_chunks <= 8))
    for u in range(rem):
        c = n_chunks * unroll + u
        o_ref[c] = (x_ref[c].astype(jnp.float32) * sum_sc[...]).astype(o_ref.dtype)


def _fused_path(x, w_flat, b_flat, vmem_limit):
    B, C, H, W = x.shape
    return pl.pallas_call(
        _fused_kernel,
        out_shape=jax.ShapeDtypeStruct((B, C, H, W), x.dtype),
        grid_spec=pltpu.PrefetchScalarGridSpec(
            num_scalar_prefetch=0,
            grid=(B,),
            in_specs=[
                pl.BlockSpec(memory_space=pltpu.MemorySpace.SMEM),   # conv weights
                pl.BlockSpec(memory_space=pltpu.MemorySpace.SMEM),   # conv bias
                pl.BlockSpec((None, C, H, W), lambda b: (b, 0, 0, 0)),
            ],
            out_specs=pl.BlockSpec((None, C, H, W), lambda b: (b, 0, 0, 0)),
            scratch_shapes=[
                pltpu.VMEM((H, W), jnp.float32),                      # channel sum / sattn
                pltpu.VMEM((H, W), jnp.float32),                      # channel max
                pltpu.VMEM((2, H + 2 * PAD, W + 2 * PAD), jnp.float32),  # padded conv in
            ],
        ),
        compiler_params=pltpu.CompilerParams(
            dimension_semantics=("parallel",),
            vmem_limit_bytes=vmem_limit),
    )(w_flat, b_flat, x)


# --------------------------------------------------------------------------
# Two-pass fallback (per-batch x too large for VMEM)
# --------------------------------------------------------------------------
def _sattn_kernel(w_ref, b_ref, x_ref, s_ref, sum_sc, max_sc, pad_sc):
    # Pass 1: grid (B, n_ct); accumulate channel sum/max over the ct axis,
    # run the conv + sigmoid on the last channel tile.
    H, W = s_ref.shape
    ct = pl.program_id(1)

    @pl.when(ct == 0)
    def _init():
        sum_sc[...] = jnp.zeros_like(sum_sc)
        max_sc[...] = jnp.full_like(max_sc, -jnp.inf)
        _zero_halo(pad_sc, H, W)

    _accumulate_channels(x_ref, sum_sc, max_sc)

    @pl.when(ct == pl.num_programs(1) - 1)
    def _finalize():
        pad_sc[0, PAD:PAD + H, PAD:PAD + W] = sum_sc[...]
        pad_sc[1, PAD:PAD + H, PAD:PAD + W] = max_sc[...]
        conv = _conv5x5(pad_sc, w_ref, b_ref, H, W)
        s_ref[...] = jax.nn.sigmoid(conv).astype(s_ref.dtype)


def _scale_kernel(s_ref, x_ref, o_ref):
    # Lane-dense flattened view: s_ref (1, hw_t) f32, x/o (c_t, hw_t).
    o_ref[...] = (x_ref[...].astype(jnp.float32) * s_ref[...]).astype(o_ref.dtype)


def _scale_kernel_4d(s_ref, x_ref, o_ref):
    # Escape hatch on the NCHW layout: s_ref (1, H, W), x/o (c_t, H, W).
    o_ref[...] = (x_ref[...].astype(jnp.float32) * s_ref[...]).astype(o_ref.dtype)


def _two_pass_path(x, w_flat, b_flat, vmem_limit):
    B, C, H, W = x.shape
    itemsize = x.dtype.itemsize
    hw = H * W
    conv_scratch_bytes = (2 * hw + 2 * (H + 2 * PAD) * (W + 2 * PAD)) * 4

    # ---- pass 1: channel-tiled reduction + conv -> sattn (B, 1, H, W) -----
    # Channel tile sized by bytes: 2 * c_t * hw * itemsize (double-buffered
    # input block) + scratch + double-buffered (H, W) f32 output <= budget.
    avail = int(vmem_limit * 0.8) - conv_scratch_bytes - 2 * hw * 4
    max_c1 = max(1, avail // (2 * hw * itemsize))
    c_t1 = _largest_divisor_leq(C, max_c1)   # any divisor is legal: (H, W) are full dims
    n_ct1 = C // c_t1

    sattn = pl.pallas_call(
        _sattn_kernel,
        out_shape=jax.ShapeDtypeStruct((B, 1, H, W), jnp.float32),
        grid_spec=pltpu.PrefetchScalarGridSpec(
            num_scalar_prefetch=0,
            grid=(B, n_ct1),
            in_specs=[
                pl.BlockSpec(memory_space=pltpu.MemorySpace.SMEM),   # conv weights
                pl.BlockSpec(memory_space=pltpu.MemorySpace.SMEM),   # conv bias
                pl.BlockSpec((None, c_t1, H, W), lambda b, k: (b, k, 0, 0)),
            ],
            out_specs=pl.BlockSpec((None, None, H, W), lambda b, k: (b, 0, 0, 0)),
            scratch_shapes=[
                pltpu.VMEM((H, W), jnp.float32),
                pltpu.VMEM((H, W), jnp.float32),
                pltpu.VMEM((2, H + 2 * PAD, W + 2 * PAD), jnp.float32),
            ],
        ),
        compiler_params=pltpu.CompilerParams(
            dimension_semantics=("parallel", "arbitrary"),
            vmem_limit_bytes=vmem_limit),
    )(w_flat, b_flat, x)

    # ---- pass 2: out = sattn * x, lane-dense flattened (B, C, H*W) --------
    target_blk = min(8 << 20, vmem_limit // 6)          # ~2-8 MiB per block
    # Channel-tile candidates legal for a (c_t2, hw_t) block: multiples of 8
    # dividing C, or the full C.
    cands = sorted({d for d in range(8, C + 1, 8) if C % d == 0} | {C})
    c_t2 = None
    for d in cands:                                      # keep largest fitting
        if d * hw * itemsize <= target_blk:
            c_t2 = d
    if c_t2 is None:
        c_t2 = cands[0]                                  # rely on H*W split below

    # Optional H*W split: keeps blocks near the target and gives both v7x
    # TensorCores work for batch-1 inputs.  Chunks stay multiples of 128.
    n_hw = 1
    while (c_t2 * (hw // n_hw) * itemsize > target_blk
           and hw % (2 * n_hw) == 0 and (hw // (2 * n_hw)) % 128 == 0):
        n_hw *= 2
    if B == 1 and n_hw == 1 and hw % 256 == 0:
        n_hw = 2
    hw_t = hw // n_hw

    blk_bytes = c_t2 * hw_t * itemsize
    if 4 * blk_bytes + 2 * hw_t * 4 <= vmem_limit and (n_hw == 1 or hw_t % 128 == 0):
        x2 = x.reshape(B, C, hw)
        s2 = sattn.reshape(B, 1, hw)
        out2 = pl.pallas_call(
            _scale_kernel,
            out_shape=jax.ShapeDtypeStruct((B, C, hw), x.dtype),
            grid_spec=pltpu.PrefetchScalarGridSpec(
                num_scalar_prefetch=0,
                grid=(B, C // c_t2, n_hw),
                in_specs=[
                    pl.BlockSpec((None, 1, hw_t), lambda b, k, h: (b, 0, h)),
                    pl.BlockSpec((None, c_t2, hw_t), lambda b, k, h: (b, k, h)),
                ],
                out_specs=pl.BlockSpec((None, c_t2, hw_t), lambda b, k, h: (b, k, h)),
            ),
            compiler_params=pltpu.CompilerParams(
                dimension_semantics=("parallel", "parallel", "parallel"),
                vmem_limit_bytes=vmem_limit),
        )(s2, x2)
        return out2.reshape(B, C, H, W)

    # Escape hatch (odd C with huge, non-128-divisible H*W): NCHW blocks with
    # full (H, W) are legal for any channel-tile divisor.
    c_t2 = _largest_divisor_leq(C, max(1, (vmem_limit // 6) // (hw * itemsize)))
    return pl.pallas_call(
        _scale_kernel_4d,
        out_shape=jax.ShapeDtypeStruct((B, C, H, W), x.dtype),
        grid_spec=pltpu.PrefetchScalarGridSpec(
            num_scalar_prefetch=0,
            grid=(B, C // c_t2),
            in_specs=[
                pl.BlockSpec((None, 1, H, W), lambda b, k: (b, 0, 0, 0)),
                pl.BlockSpec((None, c_t2, H, W), lambda b, k: (b, k, 0, 0)),
            ],
            out_specs=pl.BlockSpec((None, c_t2, H, W), lambda b, k: (b, k, 0, 0)),
        ),
        compiler_params=pltpu.CompilerParams(
            dimension_semantics=("parallel", "parallel"),
            vmem_limit_bytes=vmem_limit),
    )(sattn, x)


# --------------------------------------------------------------------------
# Public wrapper
# --------------------------------------------------------------------------
def spatial_attention(x, conv_w, conv_b, *, force_two_pass=False):
    """x: (B, C, H, W); conv_w: (1, 2, 5, 5); conv_b: (1,).

    Returns sigmoid(conv5x5(cat([mean_c x, max_c x]))) * x  (NCHW, like PyTorch).
    """
    B, C, H, W = x.shape
    itemsize = x.dtype.itemsize
    hw = H * W
    vmem_limit = _vmem_limit_bytes()

    # Fold the 1/C of the channel mean into the avg-channel conv taps so the
    # kernels only need the channel SUM.
    w = conv_w.astype(jnp.float32)
    w = w.at[:, 0, :, :].multiply(1.0 / C)
    w_flat = w.reshape(-1)                              # (50,), index = c*25 + i*5 + j
    b_flat = conv_b.reshape(-1).astype(jnp.float32)     # (1,)

    conv_scratch_bytes = (2 * hw + 2 * (H + 2 * PAD) * (W + 2 * PAD)) * 4
    # Fused needs double-buffered (C, H, W) input AND output blocks + scratch.
    fused_bytes = 4 * C * hw * itemsize + conv_scratch_bytes

    if not force_two_pass and fused_bytes <= int(vmem_limit * 0.9):
        # NOTE: if the caller no longer needs x, this call could additionally
        # alias the output onto x via input_output_aliases (allocator win only).
        return _fused_path(x, w_flat, b_flat, vmem_limit)
    return _two_pass_path(x, w_flat, b_flat, vmem_limit)


def spatial_attention_ref(x, conv_w, conv_b):
    """Pure-JAX reference matching the PyTorch module."""
    x_avg = jnp.mean(x, axis=1, keepdims=True)
    x_max = jnp.max(x, axis=1, keepdims=True)
    x2 = jnp.concatenate([x_avg, x_max], axis=1)          # (B, 2, H, W)
    y = lax.conv_general_dilated(
        x2, conv_w, window_strides=(1, 1), padding=((PAD, PAD), (PAD, PAD)),
        dimension_numbers=("NCHW", "OIHW", "NCHW"))
    y = y + conv_b.reshape(1, 1, 1, 1)
    return jax.nn.sigmoid(y) * x


if __name__ == "__main__":
    key = jax.random.PRNGKey(0)
    kx, kw, kb = jax.random.split(key, 3)

    B, C, H, W = 2, 4, 16, 16
    x = jax.random.normal(kx, (B, C, H, W), dtype=jnp.float32)

    # Deterministic init mimicking nn.Conv2d(2, 1, 5): U(-k, k), k = 1/sqrt(2*5*5)
    fan_in = 2 * KH * KW
    bound = 1.0 / (fan_in ** 0.5)
    conv_w = jax.random.uniform(kw, (1, 2, KH, KW), jnp.float32, -bound, bound)
    conv_b = jax.random.uniform(kb, (1,), jnp.float32, -bound, bound)

    ref = spatial_attention_ref(x, conv_w, conv_b)

    # Fused (VMEM-resident) path — the default for this shape.
    fused_fn = jax.jit(spatial_attention)
    out = jax.block_until_ready(fused_fn(x, conv_w, conv_b))
    assert out.shape == (B, C, H, W)
    assert jnp.allclose(out, ref, atol=1e-5, rtol=1e-5), "fused path mismatch"

    # Two-pass fallback path (exercised explicitly at the small shape).
    two_pass_fn = jax.jit(functools.partial(spatial_attention, force_two_pass=True))
    out2 = jax.block_until_ready(two_pass_fn(x, conv_w, conv_b))
    assert jnp.allclose(out2, ref, atol=1e-5, rtol=1e-5), "two-pass path mismatch"

    print("KERNEL_OK")
</pallas_src>

<mosaic_0001>
module attributes {stable_mosaic.version = 11 : i64} {
  func.func @_fused_kernel(%arg0: i32, %arg1: memref<50xf32, #tpu.memory_space<smem>>, %arg2: memref<1xf32, #tpu.memory_space<smem>>, %arg3: memref<1x4x16x16xf32, #tpu.memory_space<vmem>>, %arg4: memref<1x4x16x16xf32, #tpu.memory_space<vmem>>, %arg5: memref<16x16xf32, #tpu.memory_space<vmem>>, %arg6: memref<16x16xf32, #tpu.memory_space<vmem>>, %arg7: memref<2x20x20xf32, #tpu.memory_space<vmem>>) attributes {dimension_semantics = [#tpu.dimension_semantics<parallel>], iteration_bounds = array<i64: 2>, scalar_prefetch = 0 : i64, scratch_operands = 3 : i64, tpu.core_type = #tpu.core_type<tc>, window_params = [{transform_indices = @transform_0, window_bounds = array<i64: 50>}, {transform_indices = @transform_1, window_bounds = array<i64: 1>}, {transform_indices = @transform_2, window_bounds = array<i64: 1, 4, 16, 16>}, {transform_indices = @transform_3, window_bounds = array<i64: 1, 4, 16, 16>}]} {
    %cst = arith.constant 0.000000e+00 : f32
    %0 = vector.broadcast %cst : f32 to vector<2x20xf32>
    %c0 = arith.constant 0 : index
    %c0_0 = arith.constant 0 : index
    %c0_1 = arith.constant 0 : index
    %1 = vector.load %arg7[%c0, %c0_0, %c0_1] : memref<2x20x20xf32, #tpu.memory_space<vmem>>, vector<1x2x20xf32>
    %2 = vector.shape_cast %1 : vector<1x2x20xf32> to vector<2x20xf32>
    %3 = vector.shape_cast %0 : vector<2x20xf32> to vector<1x2x20xf32>
    tpu.vector_store %arg7[%c0, %c0_0, %c0_1], %3 {strides = array<i32>} : memref<2x20x20xf32, #tpu.memory_space<vmem>>, vector<1x2x20xf32>,
    %cst_2 = arith.constant 0.000000e+00 : f32
    %4 = vector.broadcast %cst_2 : f32 to vector<2x20xf32>
    %c0_3 = arith.constant 0 : index
    %c18 = arith.constant 18 : index
    %c0_4 = arith.constant 0 : index
    %5 = vector.load %arg7[%c0_3, %c18, %c0_4] : memref<2x20x20xf32, #tpu.memory_space<vmem>>, vector<1x2x20xf32>
    %6 = vector.shape_cast %5 : vector<1x2x20xf32> to vector<2x20xf32>
    %7 = vector.shape_cast %4 : vector<2x20xf32> to vector<1x2x20xf32>
    tpu.vector_store %arg7[%c0_3, %c18, %c0_4], %7 {strides = array<i32>} : memref<2x20x20xf32, #tpu.memory_space<vmem>>, vector<1x2x20xf32>,
    %cst_5 = arith.constant 0.000000e+00 : f32
    %8 = vector.broadcast %cst_5 : f32 to vector<20x2xf32>
    %c0_6 = arith.constant 0 : index
    %c0_7 = arith.constant 0 : index
    %c0_8 = arith.constant 0 : index
    %9 = vector.load %arg7[%c0_6, %c0_7, %c0_8] : memref<2x20x20xf32, #tpu.memory_space<vmem>>, vector<1x20x2xf32>
    %10 = vector.shape_cast %9 : vector<1x20x2xf32> to vector<20x2xf32>
    %11 = vector.shape_cast %8 : vector<20x2xf32> to vector<1x20x2xf32>
    tpu.vector_store %arg7[%c0_6, %c0_7, %c0_8], %11 {strides = array<i32>} : memref<2x20x20xf32, #tpu.memory_space<vmem>>, vector<1x20x2xf32>,
    %cst_9 = arith.constant 0.000000e+00 : f32
    %12 = vector.broadcast %cst_9 : f32 to vector<20x2xf32>
    %c0_10 = arith.constant 0 : index
    %c0_11 = arith.constant 0 : index
    %c18_12 = arith.constant 18 : index
    %13 = vector.load %arg7[%c0_10, %c0_11, %c18_12] : memref<2x20x20xf32, #tpu.memory_space<vmem>>, vector<1x20x2xf32>
    %14 = vector.shape_cast %13 : vector<1x20x2xf32> to vector<20x2xf32>
    %15 = vector.shape_cast %12 : vector<20x2xf32> to vector<1x20x2xf32>
    tpu.vector_store %arg7[%c0_10, %c0_11, %c18_12], %15 {strides = array<i32>} : memref<2x20x20xf32, #tpu.memory_space<vmem>>, vector<1x20x2xf32>,
    %cst_13 = arith.constant 0.000000e+00 : f32
    %16 = vector.broadcast %cst_13 : f32 to vector<2x20xf32>
    %c1 = arith.constant 1 : index
    %c0_14 = arith.constant 0 : index
    %c0_15 = arith.constant 0 : index
    %17 = vector.load %arg7[%c1, %c0_14, %c0_15] : memref<2x20x20xf32, #tpu.memory_space<vmem>>, vector<1x2x20xf32>
    %18 = vector.shape_cast %17 : vector<1x2x20xf32> to vector<2x20xf32>
    %19 = vector.shape_cast %16 : vector<2x20xf32> to vector<1x2x20xf32>
    tpu.vector_store %arg7[%c1, %c0_14, %c0_15], %19 {strides = array<i32>} : memref<2x20x20xf32, #tpu.memory_space<vmem>>, vector<1x2x20xf32>,
    %cst_16 = arith.constant 0.000000e+00 : f32
    %20 = vector.broadcast %cst_16 : f32 to vector<2x20xf32>
    %c1_17 = arith.constant 1 : index
    %c18_18 = arith.constant 18 : index
    %c0_19 = arith.constant 0 : index
    %21 = vector.load %arg7[%c1_17, %c18_18, %c0_19] : memref<2x20x20xf32, #tpu.memory_space<vmem>>, vector<1x2x20xf32>
    %22 = vector.shape_cast %21 : vector<1x2x20xf32> to vector<2x20xf32>
    %23 = vector.shape_cast %20 : vector<2x20xf32> to vector<1x2x20xf32>
    tpu.vector_store %arg7[%c1_17, %c18_18, %c0_19], %23 {strides = array<i32>} : memref<2x20x20xf32, #tpu.memory_space<vmem>>, vector<1x2x20xf32>,
    %cst_20 = arith.constant 0.000000e+00 : f32
    %24 = vector.broadcast %cst_20 : f32 to vector<20x2xf32>
    %c1_21 = arith.constant 1 : index
    %c0_22 = arith.constant 0 : index
    %c0_23 = arith.constant 0 : index
    %25 = vector.load %arg7[%c1_21, %c0_22, %c0_23] : memref<2x20x20xf32, #tpu.memory_space<vmem>>, vector<1x20x2xf32>
    %26 = vector.shape_cast %25 : vector<1x20x2xf32> to vector<20x2xf32>
    %27 = vector.shape_cast %24 : vector<20x2xf32> to vector<1x20x2xf32>
    tpu.vector_store %arg7[%c1_21, %c0_22, %c0_23], %27 {strides = array<i32>} : memref<2x20x20xf32, #tpu.memory_space<vmem>>, vector<1x20x2xf32>,
    %cst_24 = arith.constant 0.000000e+00 : f32
    %28 = vector.broadcast %cst_24 : f32 to vector<20x2xf32>
    %c1_25 = arith.constant 1 : index
    %c0_26 = arith.constant 0 : index
    %c18_27 = arith.constant 18 : index
    %29 = vector.load %arg7[%c1_25, %c0_26, %c18_27] : memref<2x20x20xf32, #tpu.memory_space<vmem>>, vector<1x20x2xf32>
    %30 = vector.shape_cast %29 : vector<1x20x2xf32> to vector<20x2xf32>
    %31 = vector.shape_cast %28 : vector<20x2xf32> to vector<1x20x2xf32>
    tpu.vector_store %arg7[%c1_25, %c0_26, %c18_27], %31 {strides = array<i32>} : memref<2x20x20xf32, #tpu.memory_space<vmem>>, vector<1x20x2xf32>,
    %cst_28 = arith.constant 0.000000e+00 : f32
    %32 = vector.broadcast %cst_28 : f32 to vector<16x16xf32>
    %c0_29 = arith.constant 0 : index
    %c0_30 = arith.constant 0 : index
    %33 = vector.load %arg5[%c0_29, %c0_30] : memref<16x16xf32, #tpu.memory_space<vmem>>, vector<16x16xf32>
    tpu.vector_store %arg5[%c0_29, %c0_30], %32 {strides = array<i32>} : memref<16x16xf32, #tpu.memory_space<vmem>>, vector<16x16xf32>,
    %cst_31 = arith.constant 0xFF800000 : f32
    %34 = vector.broadcast %cst_31 : f32 to vector<16x16xf32>
    %c0_32 = arith.constant 0 : index
    %c0_33 = arith.constant 0 : index
    %35 = vector.load %arg6[%c0_32, %c0_33] : memref<16x16xf32, #tpu.memory_space<vmem>>, vector<16x16xf32>
    tpu.vector_store %arg6[%c0_32, %c0_33], %34 {strides = array<i32>} : memref<16x16xf32, #tpu.memory_space<vmem>>, vector<16x16xf32>,
    %c0_i32 = arith.constant 0 : i32
    %c4_i32 = arith.constant 4 : i32
    %36 = arith.muli %c0_i32, %c4_i32 : i32
    %c0_i32_34 = arith.constant 0 : i32
    %37 = arith.addi %36, %c0_i32_34 : i32
    %c0_35 = arith.constant 0 : index
    %38 = arith.index_cast %37 : i32 to index
    %c0_36 = arith.constant 0 : index
    %c0_37 = arith.constant 0 : index
    %39 = vector.load %arg3[%c0_35, %38, %c0_36, %c0_37] : memref<1x4x16x16xf32, #tpu.memory_space<vmem>>, vector<1x1x16x16xf32>
    %40 = vector.shape_cast %39 : vector<1x1x16x16xf32> to vector<16x16xf32>
    %c1_i32 = arith.constant 1 : i32
    %41 = arith.addi %36, %c1_i32 : i32
    %c0_38 = arith.constant 0 : index
    %42 = arith.index_cast %41 : i32 to index
    %c0_39 = arith.constant 0 : index
    %c0_40 = arith.constant 0 : index
    %43 = vector.load %arg3[%c0_38, %42, %c0_39, %c0_40] : memref<1x4x16x16xf32, #tpu.memory_space<vmem>>, vector<1x1x16x16xf32>
    %44 = vector.shape_cast %43 : vector<1x1x16x16xf32> to vector<16x16xf32>
    %c2_i32 = arith.constant 2 : i32
    %45 = arith.addi %36, %c2_i32 : i32
    %c0_41 = arith.constant 0 : index
    %46 = arith.index_cast %45 : i32 to index
    %c0_42 = arith.constant 0 : index
    %c0_43 = arith.constant 0 : index
    %47 = vector.load %arg3[%c0_41, %46, %c0_42, %c0_43] : memref<1x4x16x16xf32, #tpu.memory_space<vmem>>, vector<1x1x16x16xf32>
    %48 = vector.shape_cast %47 : vector<1x1x16x16xf32> to vector<16x16xf32>
    %c3_i32 = arith.constant 3 : i32
    %49 = arith.addi %36, %c3_i32 : i32
    %c0_44 = arith.constant 0 : index
    %50 = arith.index_cast %49 : i32 to index
    %c0_45 = arith.constant 0 : index
    %c0_46 = arith.constant 0 : index
    %51 = vector.load %arg3[%c0_44, %50, %c0_45, %c0_46] : memref<1x4x16x16xf32, #tpu.memory_space<vmem>>, vector<1x1x16x16xf32>
    %52 = vector.shape_cast %51 : vector<1x1x16x16xf32> to vector<16x16xf32>
    %c0_47 = arith.constant 0 : index
    %c0_48 = arith.constant 0 : index
    %53 = vector.load %arg5[%c0_47, %c0_48] : memref<16x16xf32, #tpu.memory_space<vmem>>, vector<16x16xf32>
    %54 = arith.addf %40, %44 : vector<16x16xf32>
    %55 = arith.addf %48, %52 : vector<16x16xf32>
    %56 = arith.addf %54, %55 : vector<16x16xf32>
    %57 = arith.addf %53, %56 : vector<16x16xf32>
    %c0_49 = arith.constant 0 : index
    %c0_50 = arith.constant 0 : index
    %58 = vector.load %arg5[%c0_49, %c0_50] : memref<16x16xf32, #tpu.memory_space<vmem>>, vector<16x16xf32>
    tpu.vector_store %arg5[%c0_49, %c0_50], %57 {strides = array<i32>} : memref<16x16xf32, #tpu.memory_space<vmem>>, vector<16x16xf32>,
    %c0_51 = arith.constant 0 : index
    %c0_52 = arith.constant 0 : index
    %59 = vector.load %arg6[%c0_51, %c0_52] : memref<16x16xf32, #tpu.memory_space<vmem>>, vector<16x16xf32>
    %60 = arith.maximumf %40, %44 : vector<16x16xf32>
    %61 = arith.maximumf %48, %52 : vector<16x16xf32>
    %62 = arith.maximumf %60, %61 : vector<16x16xf32>
    %63 = arith.maximumf %59, %62 : vector<16x16xf32>
    %c0_53 = arith.constant 0 : index
    %c0_54 = arith.constant 0 : index
    %64 = vector.load %arg6[%c0_53, %c0_54] : memref<16x16xf32, #tpu.memory_space<vmem>>, vector<16x16xf32>
    tpu.vector_store %arg6[%c0_53, %c0_54], %63 {strides = array<i32>} : memref<16x16xf32, #tpu.memory_space<vmem>>, vector<16x16xf32>,
    %c1_i32_55 = arith.constant 1 : i32
    %c0_56 = arith.constant 0 : index
    %c0_57 = arith.constant 0 : index
    %65 = vector.load %arg5[%c0_56, %c0_57] : memref<16x16xf32, #tpu.memory_space<vmem>>, vector<16x16xf32>
    %c0_58 = arith.constant 0 : index
    %c2 = arith.constant 2 : index
    %c2_59 = arith.constant 2 : index
    %66 = vector.load %arg7[%c0_58, %c2, %c2_59] : memref<2x20x20xf32, #tpu.memory_space<vmem>>, vector<1x16x16xf32>
    %67 = vector.shape_cast %66 : vector<1x16x16xf32> to vector<16x16xf32>
    %68 = vector.shape_cast %65 : vector<16x16xf32> to vector<1x16x16xf32>
    tpu.vector_store %arg7[%c0_58, %c2, %c2_59], %68 {strides = array<i32>} : memref<2x20x20xf32, #tpu.memory_space<vmem>>, vector<1x16x16xf32>,
    %c0_60 = arith.constant 0 : index
    %c0_61 = arith.constant 0 : index
    %69 = vector.load %arg6[%c0_60, %c0_61] : memref<16x16xf32, #tpu.memory_space<vmem>>, vector<16x16xf32>
    %c1_62 = arith.constant 1 : index
    %c2_63 = arith.constant 2 : index
    %c2_64 = arith.constant 2 : index
    %70 = vector.load %arg7[%c1_62, %c2_63, %c2_64] : memref<2x20x20xf32, #tpu.memory_space<vmem>>, vector<1x16x16xf32>
    %71 = vector.shape_cast %70 : vector<1x16x16xf32> to vector<16x16xf32>
    %72 = vector.shape_cast %69 : vector<16x16xf32> to vector<1x16x16xf32>
    tpu.vector_store %arg7[%c1_62, %c2_63, %c2_64], %72 {strides = array<i32>} : memref<2x20x20xf32, #tpu.memory_space<vmem>>, vector<1x16x16xf32>,
    %cst_65 = arith.constant 0.000000e+00 : f32
    %73 = vector.broadcast %cst_65 : f32 to vector<16x16xf32>
    %cst_66 = arith.constant 0.000000e+00 : f32
    %74 = vector.broadcast %cst_66 : f32 to vector<16x16xf32>
    %c0_67 = arith.constant 0 : index
    %c0_68 = arith.constant 0 : index
    %c0_69 = arith.constant 0 : index
    %75 = vector.load %arg7[%c0_67, %c0_68, %c0_69] : memref<2x20x20xf32, #tpu.memory_space<vmem>>, vector<1x20x16xf32>
    %76 = vector.shape_cast %75 : vector<1x20x16xf32> to vector<20x16xf32>
    %c0_70 = arith.constant 0 : index
    %77 = memref.load %arg1[%c0_70] : memref<50xf32, #tpu.memory_space<smem>>
    %78 = vector.extract_strided_slice %76 {offsets = [0, 0], sizes = [16, 16], strides = [1, 1]} : vector<20x16xf32> to vector<16x16xf32>
    %79 = vector.broadcast %77 : f32 to vector<16x16xf32>
    %80 = arith.mulf %79, %78 : vector<16x16xf32>
    %81 = arith.addf %73, %80 : vector<16x16xf32>
    %c5 = arith.constant 5 : index
    %82 = memref.load %arg1[%c5] : memref<50xf32, #tpu.memory_space<smem>>
    %83 = vector.extract_strided_slice %76 {offsets = [1, 0], sizes = [16, 16], strides = [1, 1]} : vector<20x16xf32> to vector<16x16xf32>
    %84 = vector.broadcast %82 : f32 to vector<16x16xf32>
    %85 = arith.mulf %84, %83 : vector<16x16xf32>
    %86 = arith.addf %81, %85 : vector<16x16xf32>
    %c10 = arith.constant 10 : index
    %87 = memref.load %arg1[%c10] : memref<50xf32, #tpu.memory_space<smem>>
    %88 = vector.extract_strided_slice %76 {offsets = [2, 0], sizes = [16, 16], strides = [1, 1]} : vector<20x16xf32> to vector<16x16xf32>
    %89 = vector.broadcast %87 : f32 to vector<16x16xf32>
    %90 = arith.mulf %89, %88 : vector<16x16xf32>
    %91 = arith.addf %86, %90 : vector<16x16xf32>
    %c15 = arith.constant 15 : index
    %92 = memref.load %arg1[%c15] : memref<50xf32, #tpu.memory_space<smem>>
    %93 = vector.extract_strided_slice %76 {offsets = [3, 0], sizes = [16, 16], strides = [1, 1]} : vector<20x16xf32> to vector<16x16xf32>
    %94 = vector.broadcast %92 : f32 to vector<16x16xf32>
    %95 = arith.mulf %94, %93 : vector<16x16xf32>
    %96 = arith.addf %91, %95 : vector<16x16xf32>
    %c20 = arith.constant 20 : index
    %97 = memref.load %arg1[%c20] : memref<50xf32, #tpu.memory_space<smem>>
    %98 = vector.extract_strided_slice %76 {offsets = [4, 0], sizes = [16, 16], strides = [1, 1]} : vector<20x16xf32> to vector<16x16xf32>
    %99 = vector.broadcast %97 : f32 to vector<16x16xf32>
    %100 = arith.mulf %99, %98 : vector<16x16xf32>
    %101 = arith.addf %96, %100 : vector<16x16xf32>
    %c0_71 = arith.constant 0 : index
    %c0_72 = arith.constant 0 : index
    %c1_73 = arith.constant 1 : index
    %102 = vector.load %arg7[%c0_71, %c0_72, %c1_73] : memref<2x20x20xf32, #tpu.memory_space<vmem>>, vector<1x20x16xf32>
    %103 = vector.shape_cast %102 : vector<1x20x16xf32> to vector<20x16xf32>
    %c1_74 = arith.constant 1 : index
    %104 = memref.load %arg1[%c1_74] : memref<50xf32, #tpu.memory_space<smem>>
    %105 = vector.extract_strided_slice %103 {offsets = [0, 0], sizes = [16, 16], strides = [1, 1]} : vector<20x16xf32> to vector<16x16xf32>
    %106 = vector.broadcast %104 : f32 to vector<16x16xf32>
    %107 = arith.mulf %106, %105 : vector<16x16xf32>
    %108 = arith.addf %101, %107 : vector<16x16xf32>
    %c6 = arith.constant 6 : index
    %109 = memref.load %arg1[%c6] : memref<50xf32, #tpu.memory_space<smem>>
    %110 = vector.extract_strided_slice %103 {offsets = [1, 0], sizes = [16, 16], strides = [1, 1]} : vector<20x16xf32> to vector<16x16xf32>
    %111 = vector.broadcast %109 : f32 to vector<16x16xf32>
    %112 = arith.mulf %111, %110 : vector<16x16xf32>
    %113 = arith.addf %108, %112 : vector<16x16xf32>
    %c11 = arith.constant 11 : index
    %114 = memref.load %arg1[%c11] : memref<50xf32, #tpu.memory_space<smem>>
    %115 = vector.extract_strided_slice %103 {offsets = [2, 0], sizes = [16, 16], strides = [1, 1]} : vector<20x16xf32> to vector<16x16xf32>
    %116 = vector.broadcast %114 : f32 to vector<16x16xf32>
    %117 = arith.mulf %116, %115 : vector<16x16xf32>
    %118 = arith.addf %113, %117 : vector<16x16xf32>
    %c16 = arith.constant 16 : index
    %119 = memref.load %arg1[%c16] : memref<50xf32, #tpu.memory_space<smem>>
    %120 = vector.extract_strided_slice %103 {offsets = [3, 0], sizes = [16, 16], strides = [1, 1]} : vector<20x16xf32> to vector<16x16xf32>
    %121 = vector.broadcast %119 : f32 to vector<16x16xf32>
    %122 = arith.mulf %121, %120 : vector<16x16xf32>
    %123 = arith.addf %118, %122 : vector<16x16xf32>
    %c21 = arith.constant 21 : index
    %124 = memref.load %arg1[%c21] : memref<50xf32, #tpu.memory_space<smem>>
    %125 = vector.extract_strided_slice %103 {offsets = [4, 0], sizes = [16, 16], strides = [1, 1]} : vector<20x16xf32> to vector<16x16xf32>
    %126 = vector.broadcast %124 : f32 to vector<16x16xf32>
    %127 = arith.mulf %126, %125 : vector<16x16xf32>
    %128 = arith.addf %123, %127 : vector<16x16xf32>
    %c0_75 = arith.constant 0 : index
    %c0_76 = arith.constant 0 : index
    %c2_77 = arith.constant 2 : index
    %129 = vector.load %arg7[%c0_75, %c0_76, %c2_77] : memref<2x20x20xf32, #tpu.memory_space<vmem>>, vector<1x20x16xf32>
    %130 = vector.shape_cast %129 : vector<1x20x16xf32> to vector<20x16xf32>
    %c2_78 = arith.constant 2 : index
    %131 = memref.load %arg1[%c2_78] : memref<50xf32, #tpu.memory_space<smem>>
    %132 = vector.extract_strided_slice %130 {offsets = [0, 0], sizes = [16, 16], strides = [1, 1]} : vector<20x16xf32> to vector<16x16xf32>
    %133 = vector.broadcast %131 : f32 to vector<16x16xf32>
    %134 = arith.mulf %133, %132 : vector<16x16xf32>
    %135 = arith.addf %128, %134 : vector<16x16xf32>
    %c7 = arith.constant 7 : index
    %136 = memref.load %arg1[%c7] : memref<50xf32, #tpu.memory_space<smem>>
    %137 = vector.extract_strided_slice %130 {offsets = [1, 0], sizes = [16, 16], strides = [1, 1]} : vector<20x16xf32> to vector<16x16xf32>
    %138 = vector.broadcast %136 : f32 to vector<16x16xf32>
    %139 = arith.mulf %138, %137 : vector<16x16xf32>
    %140 = arith.addf %135, %139 : vector<16x16xf32>
    %c12 = arith.constant 12 : index
    %141 = memref.load %arg1[%c12] : memref<50xf32, #tpu.memory_space<smem>>
    %142 = vector.extract_strided_slice %130 {offsets = [2, 0], sizes = [16, 16], strides = [1, 1]} : vector<20x16xf32> to vector<16x16xf32>
    %143 = vector.broadcast %141 : f32 to vector<16x16xf32>
    %144 = arith.mulf %143, %142 : vector<16x16xf32>
    %145 = arith.addf %140, %144 : vector<16x16xf32>
    %c17 = arith.constant 17 : index
    %146 = memref.load %arg1[%c17] : memref<50xf32, #tpu.memory_space<smem>>
    %147 = vector.extract_strided_slice %130 {offsets = [3, 0], sizes = [16, 16], strides = [1, 1]} : vector<20x16xf32> to vector<16x16xf32>
    %148 = vector.broadcast %146 : f32 to vector<16x16xf32>
    %149 = arith.mulf %148, %147 : vector<16x16xf32>
    %150 = arith.addf %145, %149 : vector<16x16xf32>
    %c22 = arith.constant 22 : index
    %151 = memref.load %arg1[%c22] : memref<50xf32, #tpu.memory_space<smem>>
    %152 = vector.extract_strided_slice %130 {offsets = [4, 0], sizes = [16, 16], strides = [1, 1]} : vector<20x16xf32> to vector<16x16xf32>
    %153 = vector.broadcast %151 : f32 to vector<16x16xf32>
    %154 = arith.mulf %153, %152 : vector<16x16xf32>
    %155 = arith.addf %150, %154 : vector<16x16xf32>
    %c0_79 = arith.constant 0 : index
    %c0_80 = arith.constant 0 : index
    %c3 = arith.constant 3 : index
    %156 = vector.load %arg7[%c0_79, %c0_80, %c3] : memref<2x20x20xf32, #tpu.memory_space<vmem>>, vector<1x20x16xf32>
    %157 = vector.shape_cast %156 : vector<1x20x16xf32> to vector<20x16xf32>
    %c3_81 = arith.constant 3 : index
    %158 = memref.load %arg1[%c3_81] : memref<50xf32, #tpu.memory_space<smem>>
    %159 = vector.extract_strided_slice %157 {offsets = [0, 0], sizes = [16, 16], strides = [1, 1]} : vector<20x16xf32> to vector<16x16xf32>
    %160 = vector.broadcast %158 : f32 to vector<16x16xf32>
    %161 = arith.mulf %160, %159 : vector<16x16xf32>
    %162 = arith.addf %155, %161 : vector<16x16xf32>
    %c8 = arith.constant 8 : index
    %163 = memref.load %arg1[%c8] : memref<50xf32, #tpu.memory_space<smem>>
    %164 = vector.extract_strided_slice %157 {offsets = [1, 0], sizes = [16, 16], strides = [1, 1]} : vector<20x16xf32> to vector<16x16xf32>
    %165 = vector.broadcast %163 : f32 to vector<16x16xf32>
    %166 = arith.mulf %165, %164 : vector<16x16xf32>
    %167 = arith.addf %162, %166 : vector<16x16xf32>
    %c13 = arith.constant 13 : index
    %168 = memref.load %arg1[%c13] : memref<50xf32, #tpu.memory_space<smem>>
    %169 = vector.extract_strided_slice %157 {offsets = [2, 0], sizes = [16, 16], strides = [1, 1]} : vector<20x16xf32> to vector<16x16xf32>
    %170 = vector.broadcast %168 : f32 to vector<16x16xf32>
    %171 = arith.mulf %170, %169 : vector<16x16xf32>
    %172 = arith.addf %167, %171 : vector<16x16xf32>
    %c18_82 = arith.constant 18 : index
    %173 = memref.load %arg1[%c18_82] : memref<50xf32, #tpu.memory_space<smem>>
    %174 = vector.extract_strided_slice %157 {offsets = [3, 0], sizes = [16, 16], strides = [1, 1]} : vector<20x16xf32> to vector<16x16xf32>
    %175 = vector.broadcast %173 : f32 to vector<16x16xf32>
    %176 = arith.mulf %175, %174 : vector<16x16xf32>
    %177 = arith.addf %172, %176 : vector<16x16xf32>
    %c23 = arith.constant 23 : index
    %178 = memref.load %arg1[%c23] : memref<50xf32, #tpu.memory_space<smem>>
    %179 = vector.extract_strided_slice %157 {offsets = [4, 0], sizes = [16, 16], strides = [1, 1]} : vector<20x16xf32> to vector<16x16xf32>
    %180 = vector.broadcast %178 : f32 to vector<16x16xf32>
    %181 = arith.mulf %180, %179 : vector<16x16xf32>
    %182 = arith.addf %177, %181 : vector<16x16xf32>
    %c0_83 = arith.constant 0 : index
    %c0_84 = arith.constant 0 : index
    %c4 = arith.constant 4 : index
    %183 = vector.load %arg7[%c0_83, %c0_84, %c4] : memref<2x20x20xf32, #tpu.memory_space<vmem>>, vector<1x20x16xf32>
    %184 = vector.shape_cast %183 : vector<1x20x16xf32> to vector<20x16xf32>
    %c4_85 = arith.constant 4 : index
    %185 = memref.load %arg1[%c4_85] : memref<50xf32, #tpu.memory_space<smem>>
    %186 = vector.extract_strided_slice %184 {offsets = [0, 0], sizes = [16, 16], strides = [1, 1]} : vector<20x16xf32> to vector<16x16xf32>
    %187 = vector.broadcast %185 : f32 to vector<16x16xf32>
    %188 = arith.mulf %187, %186 : vector<16x16xf32>
    %189 = arith.addf %182, %188 : vector<16x16xf32>
    %c9 = arith.constant 9 : index
    %190 = memref.load %arg1[%c9] : memref<50xf32, #tpu.memory_space<smem>>
    %191 = vector.extract_strided_slice %184 {offsets = [1, 0], sizes = [16, 16], strides = [1, 1]} : vector<20x16xf32> to vector<16x16xf32>
    %192 = vector.broadcast %190 : f32 to vector<16x16xf32>
    %193 = arith.mulf %192, %191 : vector<16x16xf32>
    %194 = arith.addf %189, %193 : vector<16x16xf32>
    %c14 = arith.constant 14 : index
    %195 = memref.load %arg1[%c14] : memref<50xf32, #tpu.memory_space<smem>>
    %196 = vector.extract_strided_slice %184 {offsets = [2, 0], sizes = [16, 16], strides = [1, 1]} : vector<20x16xf32> to vector<16x16xf32>
    %197 = vector.broadcast %195 : f32 to vector<16x16xf32>
    %198 = arith.mulf %197, %196 : vector<16x16xf32>
    %199 = arith.addf %194, %198 : vector<16x16xf32>
    %c19 = arith.constant 19 : index
    %200 = memref.load %arg1[%c19] : memref<50xf32, #tpu.memory_space<smem>>
    %201 = vector.extract_strided_slice %184 {offsets = [3, 0], sizes = [16, 16], strides = [1, 1]} : vector<20x16xf32> to vector<16x16xf32>
    %202 = vector.broadcast %200 : f32 to vector<16x16xf32>
    %203 = arith.mulf %202, %201 : vector<16x16xf32>
    %204 = arith.addf %199, %203 : vector<16x16xf32>
    %c24 = arith.constant 24 : index
    %205 = memref.load %arg1[%c24] : memref<50xf32, #tpu.memory_space<smem>>
    %206 = vector.extract_strided_slice %184 {offsets = [4, 0], sizes = [16, 16], strides = [1, 1]} : vector<20x16xf32> to vector<16x16xf32>
    %207 = vector.broadcast %205 : f32 to vector<16x16xf32>
    %208 = arith.mulf %207, %206 : vector<16x16xf32>
    %209 = arith.addf %204, %208 : vector<16x16xf32>
    %c1_86 = arith.constant 1 : index
    %c0_87 = arith.constant 0 : index
    %c0_88 = arith.constant 0 : index
    %210 = vector.load %arg7[%c1_86, %c0_87, %c0_88] : memref<2x20x20xf32, #tpu.memory_space<vmem>>, vector<1x20x16xf32>
    %211 = vector.shape_cast %210 : vector<1x20x16xf32> to vector<20x16xf32>
    %c25 = arith.constant 25 : index
    %212 = memref.load %arg1[%c25] : memref<50xf32, #tpu.memory_space<smem>>
    %213 = vector.extract_strided_slice %211 {offsets = [0, 0], sizes = [16, 16], strides = [1, 1]} : vector<20x16xf32> to vector<16x16xf32>
    %214 = vector.broadcast %212 : f32 to vector<16x16xf32>
    %215 = arith.mulf %214, %213 : vector<16x16xf32>
    %216 = arith.addf %74, %215 : vector<16x16xf32>
    %c30 = arith.constant 30 : index
    %217 = memref.load %arg1[%c30] : memref<50xf32, #tpu.memory_space<smem>>
    %218 = vector.extract_strided_slice %211 {offsets = [1, 0], sizes = [16, 16], strides = [1, 1]} : vector<20x16xf32> to vector<16x16xf32>
    %219 = vector.broadcast %217 : f32 to vector<16x16xf32>
    %220 = arith.mulf %219, %218 : vector<16x16xf32>
    %221 = arith.addf %216, %220 : vector<16x16xf32>
    %c35 = arith.constant 35 : index
    %222 = memref.load %arg1[%c35] : memref<50xf32, #tpu.memory_space<smem>>
    %223 = vector.extract_strided_slice %211 {offsets = [2, 0], sizes = [16, 16], strides = [1, 1]} : vector<20x16xf32> to vector<16x16xf32>
    %224 = vector.broadcast %222 : f32 to vector<16x16xf32>
    %225 = arith.mulf %224, %223 : vector<16x16xf32>
    %226 = arith.addf %221, %225 : vector<16x16xf32>
    %c40 = arith.constant 40 : index
    %227 = memref.load %arg1[%c40] : memref<50xf32, #tpu.memory_space<smem>>
    %228 = vector.extract_strided_slice %211 {offsets = [3, 0], sizes = [16, 16], strides = [1, 1]} : vector<20x16xf32> to vector<16x16xf32>
    %229 = vector.broadcast %227 : f32 to vector<16x16xf32>
    %230 = arith.mulf %229, %228 : vector<16x16xf32>
    %231 = arith.addf %226, %230 : vector<16x16xf32>
    %c45 = arith.constant 45 : index
    %232 = memref.load %arg1[%c45] : memref<50xf32, #tpu.memory_space<smem>>
    %233 = vector.extract_strided_slice %211 {offsets = [4, 0], sizes = [16, 16], strides = [1, 1]} : vector<20x16xf32> to vector<16x16xf32>
    %234 = vector.broadcast %232 : f32 to vector<16x16xf32>
    %235 = arith.mulf %234, %233 : vector<16x16xf32>
    %236 = arith.addf %231, %235 : vector<16x16xf32>
    %c1_89 = arith.constant 1 : index
    %c0_90 = arith.constant 0 : index
    %c1_91 = arith.constant 1 : index
    %237 = vector.load %arg7[%c1_89, %c0_90, %c1_91] : memref<2x20x20xf32, #tpu.memory_space<vmem>>, vector<1x20x16xf32>
    %238 = vector.shape_cast %237 : vector<1x20x16xf32> to vector<20x16xf32>
    %c26 = arith.constant 26 : index
    %239 = memref.load %arg1[%c26] : memref<50xf32, #tpu.memory_space<smem>>
    %240 = vector.extract_strided_slice %238 {offsets = [0, 0], sizes = [16, 16], strides = [1, 1]} : vector<20x16xf32> to vector<16x16xf32>
    %241 = vector.broadcast %239 : f32 to vector<16x16xf32>
    %242 = arith.mulf %241, %240 : vector<16x16xf32>
    %243 = arith.addf %236, %242 : vector<16x16xf32>
    %c31 = arith.constant 31 : index
    %244 = memref.load %arg1[%c31] : memref<50xf32, #tpu.memory_space<smem>>
    %245 = vector.extract_strided_slice %238 {offsets = [1, 0], sizes = [16, 16], strides = [1, 1]} : vector<20x16xf32> to vector<16x16xf32>
    %246 = vector.broadcast %244 : f32 to vector<16x16xf32>
    %247 = arith.mulf %246, %245 : vector<16x16xf32>
    %248 = arith.addf %243, %247 : vector<16x16xf32>
    %c36 = arith.constant 36 : index
    %249 = memref.load %arg1[%c36] : memref<50xf32, #tpu.memory_space<smem>>
    %250 = vector.extract_strided_slice %238 {offsets = [2, 0], sizes = [16, 16], strides = [1, 1]} : vector<20x16xf32> to vector<16x16xf32>
    %251 = vector.broadcast %249 : f32 to vector<16x16xf32>
    %252 = arith.mulf %251, %250 : vector<16x16xf32>
    %253 = arith.addf %248, %252 : vector<16x16xf32>
    %c41 = arith.constant 41 : index
    %254 = memref.load %arg1[%c41] : memref<50xf32, #tpu.memory_space<smem>>
    %255 = vector.extract_strided_slice %238 {offsets = [3, 0], sizes = [16, 16], strides = [1, 1]} : vector<20x16xf32> to vector<16x16xf32>
    %256 = vector.broadcast %254 : f32 to vector<16x16xf32>
    %257 = arith.mulf %256, %255 : vector<16x16xf32>
    %258 = arith.addf %253, %257 : vector<16x16xf32>
    %c46 = arith.constant 46 : index
    %259 = memref.load %arg1[%c46] : memref<50xf32, #tpu.memory_space<smem>>
    %260 = vector.extract_strided_slice %238 {offsets = [4, 0], sizes = [16, 16], strides = [1, 1]} : vector<20x16xf32> to vector<16x16xf32>
    %261 = vector.broadcast %259 : f32 to vector<16x16xf32>
    %262 = arith.mulf %261, %260 : vector<16x16xf32>
    %263 = arith.addf %258, %262 : vector<16x16xf32>
    %c1_92 = arith.constant 1 : index
    %c0_93 = arith.constant 0 : index
    %c2_94 = arith.constant 2 : index
    %264 = vector.load %arg7[%c1_92, %c0_93, %c2_94] : memref<2x20x20xf32, #tpu.memory_space<vmem>>, vector<1x20x16xf32>
    %265 = vector.shape_cast %264 : vector<1x20x16xf32> to vector<20x16xf32>
    %c27 = arith.constant 27 : index
    %266 = memref.load %arg1[%c27] : memref<50xf32, #tpu.memory_space<smem>>
    %267 = vector.extract_strided_slice %265 {offsets = [0, 0], sizes = [16, 16], strides = [1, 1]} : vector<20x16xf32> to vector<16x16xf32>
    %268 = vector.broadcast %266 : f32 to vector<16x16xf32>
    %269 = arith.mulf %268, %267 : vector<16x16xf32>
    %270 = arith.addf %263, %269 : vector<16x16xf32>
    %c32 = arith.constant 32 : index
    %271 = memref.load %arg1[%c32] : memref<50xf32, #tpu.memory_space<smem>>
    %272 = vector.extract_strided_slice %265 {offsets = [1, 0], sizes = [16, 16], strides = [1, 1]} : vector<20x16xf32> to vector<16x16xf32>
    %273 = vector.broadcast %271 : f32 to vector<16x16xf32>
    %274 = arith.mulf %273, %272 : vector<16x16xf32>
    %275 = arith.addf %270, %274 : vector<16x16xf32>
    %c37 = arith.constant 37 : index
    %276 = memref.load %arg1[%c37] : memref<50xf32, #tpu.memory_space<smem>>
    %277 = vector.extract_strided_slice %265 {offsets = [2, 0], sizes = [16, 16], strides = [1, 1]} : vector<20x16xf32> to vector<16x16xf32>
    %278 = vector.broadcast %276 : f32 to vector<16x16xf32>
    %279 = arith.mulf %278, %277 : vector<16x16xf32>
    %280 = arith.addf %275, %279 : vector<16x16xf32>
    %c42 = arith.constant 42 : index
    %281 = memref.load %arg1[%c42] : memref<50xf32, #tpu.memory_space<smem>>
    %282 = vector.extract_strided_slice %265 {offsets = [3, 0], sizes = [16, 16], strides = [1, 1]} : vector<20x16xf32> to vector<16x16xf32>
    %283 = vector.broadcast %281 : f32 to vector<16x16xf32>
    %284 = arith.mulf %283, %282 : vector<16x16xf32>
    %285 = arith.addf %280, %284 : vector<16x16xf32>
    %c47 = arith.constant 47 : index
    %286 = memref.load %arg1[%c47] : memref<50xf32, #tpu.memory_space<smem>>
    %287 = vector.extract_strided_slice %265 {offsets = [4, 0], sizes = [16, 16], strides = [1, 1]} : vector<20x16xf32> to vector<16x16xf32>
    %288 = vector.broadcast %286 : f32 to vector<16x16xf32>
    %289 = arith.mulf %288, %287 : vector<16x16xf32>
    %290 = arith.addf %285, %289 : vector<16x16xf32>
    %c1_95 = arith.constant 1 : index
    %c0_96 = arith.constant 0 : index
    %c3_97 = arith.constant 3 : index
    %291 = vector.load %arg7[%c1_95, %c0_96, %c3_97] : memref<2x20x20xf32, #tpu.memory_space<vmem>>, vector<1x20x16xf32>
    %292 = vector.shape_cast %291 : vector<1x20x16xf32> to vector<20x16xf32>
    %c28 = arith.constant 28 : index
    %293 = memref.load %arg1[%c28] : memref<50xf32, #tpu.memory_space<smem>>
    %294 = vector.extract_strided_slice %292 {offsets = [0, 0], sizes = [16, 16], strides = [1, 1]} : vector<20x16xf32> to vector<16x16xf32>
    %295 = vector.broadcast %293 : f32 to vector<16x16xf32>
    %296 = arith.mulf %295, %294 : vector<16x16xf32>
    %297 = arith.addf %290, %296 : vector<16x16xf32>
    %c33 = arith.constant 33 : index
    %298 = memref.load %arg1[%c33] : memref<50xf32, #tpu.memory_space<smem>>
    %299 = vector.extract_strided_slice %292 {offsets = [1, 0], sizes = [16, 16], strides = [1, 1]} : vector<20x16xf32> to vector<16x16xf32>
    %300 = vector.broadcast %298 : f32 to vector<16x16xf32>
    %301 = arith.mulf %300, %299 : vector<16x16xf32>
    %302 = arith.addf %297, %301 : vector<16x16xf32>
    %c38 = arith.constant 38 : index
    %303 = memref.load %arg1[%c38] : memref<50xf32, #tpu.memory_space<smem>>
    %304 = vector.extract_strided_slice %292 {offsets = [2, 0], sizes = [16, 16], strides = [1, 1]} : vector<20x16xf32> to vector<16x16xf32>
    %305 = vector.broadcast %303 : f32 to vector<16x16xf32>
    %306 = arith.mulf %305, %304 : vector<16x16xf32>
    %307 = arith.addf %302, %306 : vector<16x16xf32>
    %c43 = arith.constant 43 : index
    %308 = memref.load %arg1[%c43] : memref<50xf32, #tpu.memory_space<smem>>
    %309 = vector.extract_strided_slice %292 {offsets = [3, 0], sizes = [16, 16], strides = [1, 1]} : vector<20x16xf32> to vector<16x16xf32>
    %310 = vector.broadcast %308 : f32 to vector<16x16xf32>
    %311 = arith.mulf %310, %309 : vector<16x16xf32>
    %312 = arith.addf %307, %311 : vector<16x16xf32>
    %c48 = arith.constant 48 : index
    %313 = memref.load %arg1[%c48] : memref<50xf32, #tpu.memory_space<smem>>
    %314 = vector.extract_strided_slice %292 {offsets = [4, 0], sizes = [16, 16], strides = [1, 1]} : vector<20x16xf32> to vector<16x16xf32>
    %315 = vector.broadcast %313 : f32 to vector<16x16xf32>
    %316 = arith.mulf %315, %314 : vector<16x16xf32>
    %317 = arith.addf %312, %316 : vector<16x16xf32>
    %c1_98 = arith.constant 1 : index
    %c0_99 = arith.constant 0 : index
    %c4_100 = arith.constant 4 : index
    %318 = vector.load %arg7[%c1_98, %c0_99, %c4_100] : memref<2x20x20xf32, #tpu.memory_space<vmem>>, vector<1x20x16xf32>
    %319 = vector.shape_cast %318 : vector<1x20x16xf32> to vector<20x16xf32>
    %c29 = arith.constant 29 : index
    %320 = memref.load %arg1[%c29] : memref<50xf32, #tpu.memory_space<smem>>
    %321 = vector.extract_strided_slice %319 {offsets = [0, 0], sizes = [16, 16], strides = [1, 1]} : vector<20x16xf32> to vector<16x16xf32>
    %322 = vector.broadcast %320 : f32 to vector<16x16xf32>
    %323 = arith.mulf %322, %321 : vector<16x16xf32>
    %324 = arith.addf %317, %323 : vector<16x16xf32>
    %c34 = arith.constant 34 : index
    %325 = memref.load %arg1[%c34] : memref<50xf32, #tpu.memory_space<smem>>
    %326 = vector.extract_strided_slice %319 {offsets = [1, 0], sizes = [16, 16], strides = [1, 1]} : vector<20x16xf32> to vector<16x16xf32>
    %327 = vector.broadcast %325 : f32 to vector<16x16xf32>
    %328 = arith.mulf %327, %326 : vector<16x16xf32>
    %329 = arith.addf %324, %328 : vector<16x16xf32>
    %c39 = arith.constant 39 : index
    %330 = memref.load %arg1[%c39] : memref<50xf32, #tpu.memory_space<smem>>
    %331 = vector.extract_strided_slice %319 {offsets = [2, 0], sizes = [16, 16], strides = [1, 1]} : vector<20x16xf32> to vector<16x16xf32>
    %332 = vector.broadcast %330 : f32 to vector<16x16xf32>
    %333 = arith.mulf %332, %331 : vector<16x16xf32>
    %334 = arith.addf %329, %333 : vector<16x16xf32>
    %c44 = arith.constant 44 : index
    %335 = memref.load %arg1[%c44] : memref<50xf32, #tpu.memory_space<smem>>
    %336 = vector.extract_strided_slice %319 {offsets = [3, 0], sizes = [16, 16], strides = [1, 1]} : vector<20x16xf32> to vector<16x16xf32>
    %337 = vector.broadcast %335 : f32 to vector<16x16xf32>
    %338 = arith.mulf %337, %336 : vector<16x16xf32>
    %339 = arith.addf %334, %338 : vector<16x16xf32>
    %c49 = arith.constant 49 : index
    %340 = memref.load %arg1[%c49] : memref<50xf32, #tpu.memory_space<smem>>
    %341 = vector.extract_strided_slice %319 {offsets = [4, 0], sizes = [16, 16], strides = [1, 1]} : vector<20x16xf32> to vector<16x16xf32>
    %342 = vector.broadcast %340 : f32 to vector<16x16xf32>
    %343 = arith.mulf %342, %341 : vector<16x16xf32>
    %344 = arith.addf %339, %343 : vector<16x16xf32>
    %345 = arith.addf %209, %344 : vector<16x16xf32>
    %c0_101 = arith.constant 0 : index
    %346 = memref.load %arg2[%c0_101] : memref<1xf32, #tpu.memory_space<smem>>
    %347 = vector.broadcast %346 : f32 to vector<16x16xf32>
    %348 = arith.addf %345, %347 : vector<16x16xf32>
    %349 = arith.negf %348 : vector<16x16xf32>
    %350 = math.exp %349 : vector<16x16xf32>
    %cst_102 = arith.constant 1.000000e+00 : f32
    %351 = vector.broadcast %cst_102 : f32 to vector<16x16xf32>
    %352 = arith.addf %351, %350 : vector<16x16xf32>
    %353 = arith.divf %351, %352 : vector<16x16xf32>
    %c0_103 = arith.constant 0 : index
    %c0_104 = arith.constant 0 : index
    %354 = vector.load %arg5[%c0_103, %c0_104] : memref<16x16xf32, #tpu.memory_space<vmem>>, vector<16x16xf32>
    tpu.vector_store %arg5[%c0_103, %c0_104], %353 {strides = array<i32>} : memref<16x16xf32, #tpu.memory_space<vmem>>, vector<16x16xf32>,
    %c0_i32_105 = arith.constant 0 : i32
    %c4_i32_106 = arith.constant 4 : i32
    %355 = arith.muli %c0_i32_105, %c4_i32_106 : i32
    %c0_107 = arith.constant 0 : index
    %c0_108 = arith.constant 0 : index
    %356 = vector.load %arg5[%c0_107, %c0_108] : memref<16x16xf32, #tpu.memory_space<vmem>>, vector<16x16xf32>
    %c0_i32_109 = arith.constant 0 : i32
    %357 = arith.addi %355, %c0_i32_109 : i32
    %c0_110 = arith.constant 0 : index
    %358 = arith.index_cast %357 : i32 to index
    %c0_111 = arith.constant 0 : index
    %c0_112 = arith.constant 0 : index
    %359 = vector.load %arg3[%c0_110, %358, %c0_111, %c0_112] : memref<1x4x16x16xf32, #tpu.memory_space<vmem>>, vector<1x1x16x16xf32>
    %360 = vector.shape_cast %359 : vector<1x1x16x16xf32> to vector<16x16xf32>
    %361 = arith.mulf %360, %356 : vector<16x16xf32>
    %c0_i32_113 = arith.constant 0 : i32
    %362 = arith.addi %355, %c0_i32_113 : i32
    %c0_114 = arith.constant 0 : index
    %363 = arith.index_cast %362 : i32 to index
    %c0_115 = arith.constant 0 : index
    %c0_116 = arith.constant 0 : index
    %364 = vector.load %arg4[%c0_114, %363, %c0_115, %c0_116] : memref<1x4x16x16xf32, #tpu.memory_space<vmem>>, vector<1x1x16x16xf32>
    %365 = vector.shape_cast %364 : vector<1x1x16x16xf32> to vector<16x16xf32>
    %366 = vector.shape_cast %361 : vector<16x16xf32> to vector<1x1x16x16xf32>
    tpu.vector_store %arg4[%c0_114, %363, %c0_115, %c0_116], %366 {strides = array<i32>} : memref<1x4x16x16xf32, #tpu.memory_space<vmem>>, vector<1x1x16x16xf32>,
    %c1_i32_117 = arith.constant 1 : i32
    %367 = arith.addi %355, %c1_i32_117 : i32
    %c0_118 = arith.constant 0 : index
    %368 = arith.index_cast %367 : i32 to index
    %c0_119 = arith.constant 0 : index
    %c0_120 = arith.constant 0 : index
    %369 = vector.load %arg3[%c0_118, %368, %c0_119, %c0_120] : memref<1x4x16x16xf32, #tpu.memory_space<vmem>>, vector<1x1x16x16xf32>
    %370 = vector.shape_cast %369 : vector<1x1x16x16xf32> to vector<16x16xf32>
    %371 = arith.mulf %370, %356 : vector<16x16xf32>
    %c1_i32_121 = arith.constant 1 : i32
    %372 = arith.addi %355, %c1_i32_121 : i32
    %c0_122 = arith.constant 0 : index
    %373 = arith.index_cast %372 : i32 to index
    %c0_123 = arith.constant 0 : index
    %c0_124 = arith.constant 0 : index
    %374 = vector.load %arg4[%c0_122, %373, %c0_123, %c0_124] : memref<1x4x16x16xf32, #tpu.memory_space<vmem>>, vector<1x1x16x16xf32>
    %375 = vector.shape_cast %374 : vector<1x1x16x16xf32> to vector<16x16xf32>
    %376 = vector.shape_cast %371 : vector<16x16xf32> to vector<1x1x16x16xf32>
    tpu.vector_store %arg4[%c0_122, %373, %c0_123, %c0_124], %376 {strides = array<i32>} : memref<1x4x16x16xf32, #tpu.memory_space<vmem>>, vector<1x1x16x16xf32>,
    %c2_i32_125 = arith.constant 2 : i32
    %377 = arith.addi %355, %c2_i32_125 : i32
    %c0_126 = arith.constant 0 : index
    %378 = arith.index_cast %377 : i32 to index
    %c0_127 = arith.constant 0 : index
    %c0_128 = arith.constant 0 : index
    %379 = vector.load %arg3[%c0_126, %378, %c0_127, %c0_128] : memref<1x4x16x16xf32, #tpu.memory_space<vmem>>, vector<1x1x16x16xf32>
    %380 = vector.shape_cast %379 : vector<1x1x16x16xf32> to vector<16x16xf32>
    %381 = arith.mulf %380, %356 : vector<16x16xf32>
    %c2_i32_129 = arith.constant 2 : i32
    %382 = arith.addi %355, %c2_i32_129 : i32
    %c0_130 = arith.constant 0 : index
    %383 = arith.index_cast %382 : i32 to index
    %c0_131 = arith.constant 0 : index
    %c0_132 = arith.constant 0 : index
    %384 = vector.load %arg4[%c0_130, %383, %c0_131, %c0_132] : memref<1x4x16x16xf32, #tpu.memory_space<vmem>>, vector<1x1x16x16xf32>
    %385 = vector.shape_cast %384 : vector<1x1x16x16xf32> to vector<16x16xf32>
    %386 = vector.shape_cast %381 : vector<16x16xf32> to vector<1x1x16x16xf32>
    tpu.vector_store %arg4[%c0_130, %383, %c0_131, %c0_132], %386 {strides = array<i32>} : memref<1x4x16x16xf32, #tpu.memory_space<vmem>>, vector<1x1x16x16xf32>,
    %c3_i32_133 = arith.constant 3 : i32
    %387 = arith.addi %355, %c3_i32_133 : i32
    %c0_134 = arith.constant 0 : index
    %388 = arith.index_cast %387 : i32 to index
    %c0_135 = arith.constant 0 : index
    %c0_136 = arith.constant 0 : index
    %389 = vector.load %arg3[%c0_134, %388, %c0_135, %c0_136] : memref<1x4x16x16xf32, #tpu.memory_space<vmem>>, vector<1x1x16x16xf32>
    %390 = vector.shape_cast %389 : vector<1x1x16x16xf32> to vector<16x16xf32>
    %391 = arith.mulf %390, %356 : vector<16x16xf32>
    %c3_i32_137 = arith.constant 3 : i32
    %392 = arith.addi %355, %c3_i32_137 : i32
    %c0_138 = arith.constant 0 : index
    %393 = arith.index_cast %392 : i32 to index
    %c0_139 = arith.constant 0 : index
    %c0_140 = arith.constant 0 : index
    %394 = vector.load %arg4[%c0_138, %393, %c0_139, %c0_140] : memref<1x4x16x16xf32, #tpu.memory_space<vmem>>, vector<1x1x16x16xf32>
    %395 = vector.shape_cast %394 : vector<1x1x16x16xf32> to vector<16x16xf32>
    %396 = vector.shape_cast %391 : vector<16x16xf32> to vector<1x1x16x16xf32>
    tpu.vector_store %arg4[%c0_138, %393, %c0_139, %c0_140], %396 {strides = array<i32>} : memref<1x4x16x16xf32, #tpu.memory_space<vmem>>, vector<1x1x16x16xf32>,
    %c1_i32_141 = arith.constant 1 : i32
    return
  }
  func.func @transform_0(%arg0: i32) -> i32 {
    %c0_i32 = arith.constant 0 : i32
    %c0_i32_0 = arith.constant 0 : i32
    return %c0_i32 : i32
  }
  func.func @transform_1(%arg0: i32) -> i32 {
    %c0_i32 = arith.constant 0 : i32
    %c0_i32_0 = arith.constant 0 : i32
    return %c0_i32 : i32
  }
  func.func @transform_2(%arg0: i32) -> (i32, i32, i32, i32) {
    %c0_i32 = arith.constant 0 : i32
    %c0_i32_0 = arith.constant 0 : i32
    %c0_i32_1 = arith.constant 0 : i32
    %c0_i32_2 = arith.constant 0 : i32
    return %arg0, %c0_i32, %c0_i32_0, %c0_i32_1 : i32, i32, i32, i32
  }
  func.func @transform_3(%arg0: i32) -> (i32, i32, i32, i32) {
    %c0_i32 = arith.constant 0 : i32
    %c0_i32_0 = arith.constant 0 : i32
    %c0_i32_1 = arith.constant 0 : i32
    %c0_i32_2 = arith.constant 0 : i32
    return %arg0, %c0_i32, %c0_i32_0, %c0_i32_1 : i32, i32, i32, i32
  }
}

</mosaic_0001>

<llo_original>
// kernel: spatial_attention.1
$region0: #{spatial_attention.1}
  #allocation0 [shape = 'u32[]', space=smem, size = 0x4, offset = 0x4, fixed_abs, tag = 'smem constant byte address 0x4 - core index']
  #allocation1 [shape = 'u32[72,128]{1,0:T(1,128)}', space=vmem, size = 0x9000, scoped, tag = 'internal scratch']
  #allocation2 [shape = 'f32[16,16]{1,0:T(8,128)}', space=vmem, size = 0x2000, scoped, tag = 'scratch operand']
  #allocation3 [shape = 'f32[16,16]{1,0:T(8,128)}', space=vmem, size = 0x2000, scoped, tag = 'scratch operand']
  #allocation4 [shape = 'f32[2,20,20]{2,1,0:T(8,128)}', space=vmem, size = 0x6000, scoped, tag = 'scratch operand']
  #allocation5 [shape = 'f32[1]{0:T(128)S(6)}', space=smem, size = 0x200, scoped, tag = 'scoped memory for spatial_attention.1']
  %s0 = inlined_call_operand.vmem [shape: f32[50], index: 0, kind: input, shape index: {}]
  %s1 = inlined_call_operand.<no memory space> [shape: f32[1], index: 1, kind: input, shape index: {}]
  %s2 = inlined_call_operand.hbm [shape: f32[2,4,16,16], index: 2, kind: input, shape index: {}]
  %s3 = inlined_call_operand.hbm [shape: f32[2,4,16,16], index: 3, kind: output, shape index: {}]
  %s4 = sld [smem:[#allocation0]]
  $region53: #{spatial_attention.1} parent=0
    _
  %s6 = ssub.s32 1, %s4
  %s7 = scalar_select 0, %s6, %s4
  %8 = sst [smem:[#allocation5]] %s1
  $region1: #{spatial_attention.1} parent=0
    #allocation6 [shape = 'u8[512]{0}', space=smem, size = 0x200, scoped, tag = 'input window, operand 0, single buffered']
    #allocation7 [shape = 's32[2]{0}', space=sflag, size = 0x8, scoped, tag = 'scoped memory for spatial_attention.1']
    #allocation8 [shape = 's32[2]{0}', space=sflag, size = 0x8, scoped, tag = 'scoped memory for spatial_attention.1']
    #allocation9 [shape = 's32[2]{0}', space=sflag, size = 0x8, scoped, tag = 'scoped memory for spatial_attention.1']
    #allocation10 [shape = 'u8[65536]{0}', space=vmem, size = 0x10000, scoped, tag = 'input window, operand 2']
    #allocation11 [shape = 'u8[65536]{0}', space=vmem, size = 0x10000, scoped, tag = 'output window, operand 0']
    %9 = vsyncpa [#allocation9], 0
    %10 = vsyncpa [#allocation7], 0
    %s11 = scalar_lea.sflag [#allocation7], 1
    %12 = vsyncpa %s11, 0
    %13 = vsyncpa [#allocation8], 0
    %s14 = scalar_lea.sflag [#allocation8], 1
    %15 = vsyncpa %s14, 0
    loop: start=0, step=1, limit=4
    $region2: #{spatial_attention.1} parent=1 // loop_pre_header
      _
    $region3: #{spatial_attention.1} parent=1 // loop_header
      %s17 = sphi 0, %s21
      %p18 = scmp.ge.s32.totalorder %s17, 4
      %s25 = sphi 0, %s25
      %s27 = sphi 0, %s25
      %s28 = sphi 0, %s27
      %s42 = sphi 0, %s28
      %s46 = sphi 0, %s46
      %s48 = sphi 0, %s46
      %s49 = sphi 0, %s48
      %s63 = sphi 0, %s49
      %s69 = sphi 0, %s71
      %s72 = sphi 0, %s69
      %s73 = sphi 0, %s72
      %s89 = sphi 0, %s73
      %s95 = sphi 0, %s97
      %s98 = sphi 0, %s95
      %s99 = sphi 0, %s98
      %s115 = sphi 0, %s99
    $region4: #{spatial_attention.1} parent=1 // loop_header_branch
      %20 = sbr.rel (%p18) target = $region8
    $region5: #{spatial_attention.1} parent=1 // loop_body
      %s22 = ssub.s32 %s17, 1
      %s23 = ssub.s32 %s17, 2
      %s24 = sadd.s32 %s17, 1
      %s26 = sadd.s32 %s25, 1
      %p29 = scmp.eq.s32.totalorder %s17, 1
      %p30 = scmp.ne.s32.totalorder %s25, %s27
      %p31 = scmp.eq.s32.totalorder %s17, 0
      %p32 = por %p30, %p31
      %p33 = scmp.ne.s32.totalorder %s25, %s27
      %p34 = scmp.eq.s32.totalorder %s22, 1
      %p35 = por %p33, %p34
      %p36 = scmp.ne.s32.totalorder %s27, %s28
      %p37 = scmp.eq.s32.totalorder %s22, 0
      %p38 = por %p36, %p37
      %p39 = scmp.ne.s32.totalorder %s27, %s28
      %p40 = scmp.eq.s32.totalorder %s23, 1
      %p41 = por %p39, %p40
      %p43 = scmp.ne.s32.totalorder %s28, %s42
      %p44 = scmp.eq.s32.totalorder %s23, 0
      %p45 = por %p43, %p44
      %s47 = sadd.s32 %s46, 1
      %p50 = scmp.eq.s32.totalorder %s17, 1
      %p51 = scmp.ne.s32.totalorder %s46, %s48
      %p52 = scmp.eq.s32.totalorder %s17, 0
      %p53 = por %p51, %p52
      %p54 = scmp.ne.s32.totalorder %s46, %s48
      %p55 = scmp.eq.s32.totalorder %s22, 1
      %p56 = por %p54, %p55
      %p57 = scmp.ne.s32.totalorder %s48, %s49
      %p58 = scmp.eq.s32.totalorder %s22, 0
      %p59 = por %p57, %p58
      %p60 = scmp.ne.s32.totalorder %s48, %s49
      %p61 = scmp.eq.s32.totalorder %s23, 1
      %p62 = por %p60, %p61
      %p64 = scmp.ne.s32.totalorder %s49, %s63
      %p65 = scmp.eq.s32.totalorder %s23, 0
      %p66 = por %p64, %p65
      %s67 = ssub.s32 %s17, %s24
      %p68 = scmp.eq.s32.totalorder %s67, 0
      %s70 = sadd.s32 %s69, 1
      %s71 = scalar_select %p68, %s69, %s70
      %p74 = pneg %p68
      %p75 = scmp.eq.s32.totalorder %s17, 1
      %p76 = por %p74, %p75
      %p77 = scmp.ne.s32.totalorder %s69, %s72
      %p78 = scmp.eq.s32.totalorder %s17, 0
      %p79 = por %p77, %p78
      %p80 = scmp.ne.s32.totalorder %s69, %s72
      %p81 = scmp.eq.s32.totalorder %s22, 1
      %p82 = por %p80, %p81
      %p83 = scmp.ne.s32.totalorder %s72, %s73
      %p84 = scmp.eq.s32.totalorder %s22, 0
      %p85 = por %p83, %p84
      %p86 = scmp.ne.s32.totalorder %s72, %s73
      %p87 = scmp.eq.s32.totalorder %s23, 1
      %p88 = por %p86, %p87
      %p90 = scmp.ne.s32.totalorder %s73, %s89
      %p91 = scmp.eq.s32.totalorder %s23, 0
      %p92 = por %p90, %p91
      %s93 = ssub.s32 %s17, %s24
      %p94 = scmp.eq.s32.totalorder %s93, 0
      %s96 = sadd.s32 %s95, 1
      %s97 = scalar_select %p94, %s95, %s96
      %p100 = pneg %p94
      %p101 = scmp.eq.s32.totalorder %s17, 1
      %p102 = por %p100, %p101
      %p103 = scmp.ne.s32.totalorder %s95, %s98
      %p104 = scmp.eq.s32.totalorder %s17, 0
      %p105 = por %p103, %p104
      %p106 = scmp.ne.s32.totalorder %s95, %s98
      %p107 = scmp.eq.s32.totalorder %s22, 1
      %p108 = por %p106, %p107
      %p109 = scmp.ne.s32.totalorder %s98, %s99
      %p110 = scmp.eq.s32.totalorder %s22, 0
      %p111 = por %p109, %p110
      %p112 = scmp.ne.s32.totalorder %s98, %s99
      %p113 = scmp.eq.s32.totalorder %s23, 1
      %p114 = por %p112, %p113
      %p116 = scmp.ne.s32.totalorder %s99, %s115
      %p117 = scmp.eq.s32.totalorder %s23, 0
      %p118 = por %p116, %p117
      %p119 = scmp.le.s32.totalorder 1, %s17
      %p120 = scmp.lt.s32.totalorder %s17, 3
      %p121 = pnand %p119, %p120
      %p122 = pneg %p121
      // Predicated region
      $region9: #{spatial_attention.1} parent=5 // pred_check
        _
      $region10: #{spatial_attention.1} parent=5 // pred_check_branch
        %124 = sbr.rel (%p121) target = $region12
      $region11: #{spatial_attention.1} parent=5 // pred_region
        %s125 = ssub.s32 %s17, 1
        // Predicated region
        $region13: #{spatial_attention.1} parent=11 // pred_check
          %p126 = pneg %p38
        $region14: #{spatial_attention.1} parent=11 // pred_check_branch
          %128 = sbr.rel (%p126) target = $region16
        $region15: #{spatial_attention.1} parent=11 // pred_region
          %130 = vsyncadd [#allocation9], 0
          %s132 = sshll.u32 %s0, 4
          %s133 = int_to_ptr.vmem [resolvable:$true] %s132
          %135 = dma.vmem_to_smem %s133, 16, [#allocation6], [#allocation9]
        $region16: #{spatial_attention.1} parent=11 // pred_fallthru
          _
        // Predicated region
        $region17: #{spatial_attention.1} parent=11 // pred_check
          %p136 = pneg %p59
        $region18: #{spatial_attention.1} parent=11 // pred_check_branch
          %138 = sbr.rel (%p136) target = $region20
        $region19: #{spatial_attention.1} parent=11 // pred_region
          _
        $region20: #{spatial_attention.1} parent=11 // pred_fallthru
          _
      $region12: #{spatial_attention.1} parent=5 // pred_fallthru
        _
      %p139 = scmp.lt.s32.totalorder %s17, 2
      // Predicated region
      $region21: #{spatial_attention.1} parent=5 // pred_check
        %p140 = pneg %p139
      $region22: #{spatial_attention.1} parent=5 // pred_check_branch
        %142 = sbr.rel (%p140) target = $region24
      $region23: #{spatial_attention.1} parent=5 // pred_region
        // Predicated region
        $region25: #{spatial_attention.1} parent=23 // pred_check
          %p143 = pneg %p79
        $region26: #{spatial_attention.1} parent=23 // pred_check_branch
          %145 = sbr.rel (%p143) target = $region28
        $region27: #{spatial_attention.1} parent=23 // pred_region
          %s146 = sand.u32 %s69, 1
          %s147 = scalar_lea.sflag [#allocation7], %s146
          %s148 = sand.u32 %s69, 1
          %s149 = smul.addr %s148, 64
          %s150 = scalar_lea.vmem [#allocation10], %s149
          %152 = vsyncadd %s147, 0
          %s153 = smul.addr %s17, 8
          %s154 = smul.addr %s153, 8
          %s155 = scalar_lea.hbm %s2, %s154
          %s156 = sshll.u32 %s155, 4
          %s157 = int_to_ptr.hbm [resolvable:$true] %s156
          %s158 = sshll.u32 %s150, 4
          %s159 = int_to_ptr.vmem [resolvable:$true] %s158
          %164 = dma.hbm_to_vmem [thread:$0]  %s157, 1024, %s159, %s147, 128, 128, 8
        $region28: #{spatial_attention.1} parent=23 // pred_fallthru
          _
      $region24: #{spatial_attention.1} parent=5 // pred_fallthru
        _
      %p165 = scmp.le.s32.totalorder 1, %s17
      %p166 = scmp.lt.s32.totalorder %s17, 3
      %p167 = pnand %p165, %p166
      %p168 = pneg %p167
      // Predicated region
      $region29: #{spatial_attention.1} parent=5 // pred_check
        _
      $region30: #{spatial_attention.1} parent=5 // pred_check_branch
        %170 = sbr.rel (%p167) target = $region32
      $region31: #{spatial_attention.1} parent=5 // pred_region
        %s171 = ssub.s32 %s17, 1
        // Predicated region
        $region33: #{spatial_attention.1} parent=31 // pred_check
          %p172 = pneg %p38
        $region34: #{spatial_attention.1} parent=31 // pred_check_branch
          %174 = sbr.rel (%p172) target = $region36
        $region35: #{spatial_attention.1} parent=31 // pred_region
          %176 = dma.done [#allocation9], 16
        $region36: #{spatial_attention.1} parent=31 // pred_fallthru
          _
        %s177 = sand.u32 %s72, 1
        %s178 = scalar_lea.sflag [#allocation7], %s177
        %s179 = sand.u32 %s72, 1
        %s180 = smul.addr %s179, 64
        %s181 = scalar_lea.vmem [#allocation10], %s180
        // Predicated region
        $region37: #{spatial_attention.1} parent=31 // pred_check
          %p182 = pneg %p85
        $region38: #{spatial_attention.1} parent=31 // pred_check_branch
          %184 = sbr.rel (%p182) target = $region40
        $region39: #{spatial_attention.1} parent=31 // pred_region
          %186 = dma.done %s178, 1024
        $region40: #{spatial_attention.1} parent=31 // pred_fallthru
          _
        %187 = sfence
        %p188 = pneg %p38
        %p189 = pneg %p35
        %p190 = pneg %p59
        %p191 = pneg %p56
        %s192 = sand.u32 %s72, 1
        %s193 = scalar_lea.sflag [#allocation7], %s192
        %s194 = sand.u32 %s72, 1
        %s195 = smul.addr %s194, 64
        %s196 = scalar_lea.vmem [#allocation10], %s195
        %p197 = pneg %p85
        %p198 = pneg %p82
        %p199 = pneg %p111
        %p200 = pneg %p108
        %s201 = sand.u32 %s98, 1
        %s202 = scalar_lea.sflag [#allocation8], %s201
        %s203 = sand.u32 %s98, 1
        %s204 = smul.addr %s203, 64
        %s205 = scalar_lea.vmem [#allocation11], %s204
        %vm206 = vcmask 156672
        %207 = vst.msk [vmem:[#allocation4] sm:$0x3] %vm206, 0.0
        %208 = vst.msk [vmem:[#allocation4 + $0x12] sm:$0x3] %vm206, 0.0
        %vm209 = vcmask 15360
        %210 = vst.msk [vmem:[#allocation4] sm:$0xff] %vm209, 0.0
        %211 = vst.msk [vmem:[#allocation4 + $0x8] sm:$0xff] %vm209, 0.0
        %vm212 = vcmask 11264
        %213 = vst.msk [vmem:[#allocation4 + $0x10] sm:$0xf] %vm212, 0.0
        %vm214 = vcmask 162960
        %215 = vst.msk [vmem:[#allocation4] sm:$0xff] %vm214, 0.0
        %216 = vst.msk [vmem:[#allocation4 + $0x8] sm:$0xff] %vm214, 0.0
        %vm217 = vcmask 158864
        %218 = vst.msk [vmem:[#allocation4 + $0x10] sm:$0xf] %vm217, 0.0
        %s219 = scalar_lea.vmem [#allocation4], 24
        %220 = vst.msk [vmem:[%s219] sm:$0x3] %vm206, 0.0
        %221 = vst.msk [vmem:[%s219 + $0x12] sm:$0x3] %vm206, 0.0
        %222 = vst.msk [vmem:[%s219] sm:$0xff] %vm209, 0.0
        %223 = vst.msk [vmem:[%s219 + $0x8] sm:$0xff] %vm209, 0.0
        %224 = vst.msk [vmem:[%s219 + $0x10] sm:$0xf] %vm212, 0.0
        %225 = vst.msk [vmem:[%s219] sm:$0xff] %vm214, 0.0
        %226 = vst.msk [vmem:[%s219 + $0x8] sm:$0xff] %vm214, 0.0
        %227 = vst.msk [vmem:[%s219 + $0x10] sm:$0xf] %vm217, 0.0
        %vm228 = vcmask 130048
        %229 = vst.msk [vmem:[#allocation2] sm:$0xff] %vm228, 0.0
        %230 = vst.msk [vmem:[#allocation2 + $0x8] sm:$0xff] %vm228, 0.0
        %231 = vst.msk [vmem:[#allocation3] sm:$0xff] %vm228, -inf
        %232 = vst.msk [vmem:[#allocation3 + $0x8] sm:$0xff] %vm228, -inf
        %v233 = vld [vmem:[%s181] sm:$0xff]
        %v234 = vld [vmem:[%s181 + $0x8] sm:$0xff]
        %s235 = scalar_lea.vmem %s181, 16 [#allocation10]
        %v236 = vld [vmem:[%s235] sm:$0xff]
        %v237 = vld [vmem:[%s235 + $0x8] sm:$0xff]
        %s238 = scalar_lea.vmem %s181, 32 [#allocation10]
        %v239 = vld [vmem:[%s238] sm:$0xff]
        %v240 = vld [vmem:[%s238 + $0x8] sm:$0xff]
        %s241 = scalar_lea.vmem %s181, 48 [#allocation10]
        %v242 = vld [vmem:[%s241] sm:$0xff]
        %v243 = vld [vmem:[%s241 + $0x8] sm:$0xff]
        %v244 = vld [vmem:[#allocation2] sm:$0xff]
        %v245 = vld [vmem:[#allocation2 + $0x8] sm:$0xff]
        %v246 = vadd.f32 %v233, %v236
        %v247 = vadd.f32 %v234, %v237
        %v248 = vadd.f32 %v239, %v242
        %v249 = vadd.f32 %v240, %v243
        %v250 = vadd.f32 %v246, %v248
        %v251 = vadd.f32 %v247, %v249
        %v252 = vadd.f32 %v244, %v250
        %v253 = vadd.f32 %v245, %v251
        %254 = vst.msk [vmem:[#allocation2] sm:$0xff] %vm228, %v252
        %255 = vst.msk [vmem:[#allocation2 + $0x8] sm:$0xff] %vm228, %v253
        %v256 = vld [vmem:[#allocation3] sm:$0xff]
        %v257 = vld [vmem:[#allocation3 + $0x8] sm:$0xff]
        %v258 = vmax.f32 %v233, %v236
        %v259 = vmax.f32 %v234, %v237
        %v260 = vmax.f32 %v239, %v242
        %v261 = vmax.f32 %v240, %v243
        %v262 = vmax.f32 %v258, %v260
        %v263 = vmax.f32 %v259, %v261
        %v264 = vmax.f32 %v256, %v262
        %v265 = vmax.f32 %v257, %v263
        %266 = vst.msk [vmem:[#allocation3] sm:$0xff] %vm228, %v264
        %267 = vst.msk [vmem:[#allocation3 + $0x8] sm:$0xff] %vm228, %v265
        %v268 = vld [vmem:[#allocation2] sm:$0xff]
        %v269 = vld [vmem:[#allocation2 + $0x8] sm:$0xff]
        %272 = vrot.lane.b32.xlu0 %v268, 2
        %v273 = vpop.permute.xlu0 %272
        %274 = vrot.lane.b32.xlu0 %v269, 2
        %v275 = vpop.permute.xlu0 %274
        %vm278 = vcmask 146448
        %279 = vst.msk [vmem:[#allocation4 + $0x2] sm:$0xff] %vm278, %v273
        %280 = vst.msk [vmem:[#allocation4 + $0xa] sm:$0xff] %vm278, %v275
        %v281 = vld [vmem:[#allocation3] sm:$0xff]
        %v282 = vld [vmem:[#allocation3 + $0x8] sm:$0xff]
        %285 = vrot.lane.b32.xlu0 %v281, 2
        %v286 = vpop.permute.xlu0 %285
        %287 = vrot.lane.b32.xlu0 %v282, 2
        %v288 = vpop.permute.xlu0 %287
        %291 = vst.msk [vmem:[%s219 + $0x2] sm:$0xff] %vm278, %v286
        %292 = vst.msk [vmem:[%s219 + $0xa] sm:$0xff] %vm278, %v288
        %v293 = vld [vmem:[#allocation4] sm:$0xff]
        %v294 = vld [vmem:[#allocation4 + $0x8] sm:$0xff]
        %v295 = vld [vmem:[#allocation4 + $0x10] sm:$0xf]
        %s296 = sld [smem:[#allocation6]]
        %v297 = vstv %s296
        %v298 = vmul.f32 %v297, %v293
        %v299 = vmul.f32 %v297, %v294
        %v300 = vadd.f32 %v298, 0.0
        %v301 = vadd.f32 %v299, 0.0
        %s302 = sld [smem:[#allocation6 + $0x5]]
        %v303 = vstv %s302
        %v304 = vmul.f32 %v303, %v293
        %v305 = vmul.f32 %v303, %v294
        %v306 = vmul.f32 %v303, %v295
        %vm310 = vcmask 1046528
        %v311 = vrot.slane %v304, 1
        %v312 = vrot.slane %v305, 1
        %v313 = vsel %vm310, %v311, %v312
        %v314 = vrot.slane %v306, 1
        %v315 = vsel %vm310, %v312, %v314
        %v318 = vadd.f32 %v300, %v313
        %v319 = vadd.f32 %v301, %v315
        %s320 = sld [smem:[#allocation6 + $0xa]]
        %v321 = vstv %s320
        %v322 = vmul.f32 %v321, %v293
        %v323 = vmul.f32 %v321, %v294
        %v324 = vmul.f32 %v321, %v295
        %vm328 = vcmask 1045504
        %v329 = vrot.slane %v322, 2
        %v330 = vrot.slane %v323, 2
        %v331 = vsel %vm328, %v329, %v330
        %v332 = vrot.slane %v324, 2
        %v333 = vsel %vm328, %v330, %v332
        %v336 = vadd.f32 %v318, %v331
        %v337 = vadd.f32 %v319, %v333
        %s338 = sld [smem:[#allocation6 + $0xf]]
        %v339 = vstv %s338
        %v340 = vmul.f32 %v339, %v293
        %v341 = vmul.f32 %v339, %v294
        %v342 = vmul.f32 %v339, %v295
        %vm346 = vcmask 1044480
        %v347 = vrot.slane %v340, 3
        %v348 = vrot.slane %v341, 3
        %v349 = vsel %vm346, %v347, %v348
        %v350 = vrot.slane %v342, 3
        %v351 = vsel %vm346, %v348, %v350
        %v354 = vadd.f32 %v336, %v349
        %v355 = vadd.f32 %v337, %v351
        %s356 = sld [smem:[#allocation6 + $0x14]]
        %v357 = vstv %s356
        %v358 = vmul.f32 %v357, %v293
        %v359 = vmul.f32 %v357, %v294
        %v360 = vmul.f32 %v357, %v295
        %vm364 = vcmask 1043456
        %v365 = vrot.slane %v358, 4
        %v366 = vrot.slane %v359, 4
        %v367 = vsel %vm364, %v365, %v366
        %v368 = vrot.slane %v360, 4
        %v369 = vsel %vm364, %v366, %v368
        %v372 = vadd.f32 %v354, %v367
        %v373 = vadd.f32 %v355, %v369
        %s374 = sld [smem:[#allocation6 + $0x1]]
        %v375 = vstv %s374
        %v376 = vmul.f32 %v375, %v293
        %v377 = vmul.f32 %v375, %v294
        %380 = vrot.lane.b32.xlu0 %v376, 127
        %v381 = vpop.permute.xlu0 %380
        %382 = vrot.lane.b32.xlu0 %v377, 127
        %v383 = vpop.permute.xlu0 %382
        %v386 = vadd.f32 %v372, %v381
        %v387 = vadd.f32 %v373, %v383
        %s388 = sld [smem:[#allocation6 + $0x6]]
        %v389 = vstv %s388
        %v390 = vmul.f32 %v389, %v293
        %v391 = vmul.f32 %v389, %v294
        %v392 = vmul.f32 %v389, %v295
        %v396 = vrot.slane %v390, 1
        %v397 = vrot.slane %v391, 1
        %v398 = vsel %vm310, %v396, %v397
        %v399 = vrot.slane %v392, 1
        %v400 = vsel %vm310, %v397, %v399
        %401 = vrot.lane.b32.xlu0 %v398, 127
        %v402 = vpop.permute.xlu0 %401
        %403 = vrot.lane.b32.xlu0 %v400, 127
        %v404 = vpop.permute.xlu0 %403
        %v407 = vadd.f32 %v386, %v402
        %v408 = vadd.f32 %v387, %v404
        %s409 = sld [smem:[#allocation6 + $0xb]]
        %v410 = vstv %s409
        %v411 = vmul.f32 %v410, %v293
        %v412 = vmul.f32 %v410, %v294
        %v413 = vmul.f32 %v410, %v295
        %v417 = vrot.slane %v411, 2
        %v418 = vrot.slane %v412, 2
        %v419 = vsel %vm328, %v417, %v418
        %v420 = vrot.slane %v413, 2
        %v421 = vsel %vm328, %v418, %v420
        %422 = vrot.lane.b32.xlu0 %v419, 127
        %v423 = vpop.permute.xlu0 %422
        %424 = vrot.lane.b32.xlu0 %v421, 127
        %v425 = vpop.permute.xlu0 %424
        %v428 = vadd.f32 %v407, %v423
        %v429 = vadd.f32 %v408, %v425
        %s430 = sld [smem:[#allocation6 + $0x10]]
        %v431 = vstv %s430
        %v432 = vmul.f32 %v431, %v293
        %v433 = vmul.f32 %v431, %v294
        %v434 = vmul.f32 %v431, %v295
        %v438 = vrot.slane %v432, 3
        %v439 = vrot.slane %v433, 3
        %v440 = vsel %vm346, %v438, %v439
        %v441 = vrot.slane %v434, 3
        %v442 = vsel %vm346, %v439, %v441
        %443 = vrot.lane.b32.xlu0 %v440, 127
        %v444 = vpop.permute.xlu0 %443
        %445 = vrot.lane.b32.xlu0 %v442, 127
        %v446 = vpop.permute.xlu0 %445
        %v449 = vadd.f32 %v428, %v444
        %v450 = vadd.f32 %v429, %v446
        %s451 = sld [smem:[#allocation6 + $0x15]]
        %v452 = vstv %s451
        %v453 = vmul.f32 %v452, %v293
        %v454 = vmul.f32 %v452, %v294
        %v455 = vmul.f32 %v452, %v295
        %v459 = vrot.slane %v453, 4
        %v460 = vrot.slane %v454, 4
        %v461 = vsel %vm364, %v459, %v460
        %v462 = vrot.slane %v455, 4
        %v463 = vsel %vm364, %v460, %v462
        %464 = vrot.lane.b32.xlu0 %v461, 127
        %v465 = vpop.permute.xlu0 %464
        %466 = vrot.lane.b32.xlu0 %v463, 127
        %v467 = vpop.permute.xlu0 %466
        %v470 = vadd.f32 %v449, %v465
        %v471 = vadd.f32 %v450, %v467
        %s472 = sld [smem:[#allocation6 + $0x2]]
        %v473 = vstv %s472
        %v474 = vmul.f32 %v473, %v293
        %v475 = vmul.f32 %v473, %v294
        %478 = vrot.lane.b32.xlu0 %v474, 126
        %v479 = vpop.permute.xlu0 %478
        %480 = vrot.lane.b32.xlu0 %v475, 126
        %v481 = vpop.permute.xlu0 %480
        %v484 = vadd.f32 %v470, %v479
        %v485 = vadd.f32 %v471, %v481
        %s486 = sld [smem:[#allocation6 + $0x7]]
        %v487 = vstv %s486
        %v488 = vmul.f32 %v487, %v293
        %v489 = vmul.f32 %v487, %v294
        %v490 = vmul.f32 %v487, %v295
        %v494 = vrot.slane %v488, 1
        %v495 = vrot.slane %v489, 1
        %v496 = vsel %vm310, %v494, %v495
        %v497 = vrot.slane %v490, 1
        %v498 = vsel %vm310, %v495, %v497
        %499 = vrot.lane.b32.xlu0 %v496, 126
        %v500 = vpop.permute.xlu0 %499
        %501 = vrot.lane.b32.xlu0 %v498, 126
        %v502 = vpop.permute.xlu0 %501
        %v505 = vadd.f32 %v484, %v500
        %v506 = vadd.f32 %v485, %v502
        %s507 = sld [smem:[#allocation6 + $0xc]]
        %v508 = vstv %s507
        %v509 = vmul.f32 %v508, %v293
        %v510 = vmul.f32 %v508, %v294
        %v511 = vmul.f32 %v508, %v295
        %v515 = vrot.slane %v509, 2
        %v516 = vrot.slane %v510, 2
        %v517 = vsel %vm328, %v515, %v516
        %v518 = vrot.slane %v511, 2
        %v519 = vsel %vm328, %v516, %v518
        %520 = vrot.lane.b32.xlu0 %v517, 126
        %v521 = vpop.permute.xlu0 %520
        %522 = vrot.lane.b32.xlu0 %v519, 126
        %v523 = vpop.permute.xlu0 %522
        %v526 = vadd.f32 %v505, %v521
        %v527 = vadd.f32 %v506, %v523
        %s528 = sld [smem:[#allocation6 + $0x11]]
        %v529 = vstv %s528
        %v530 = vmul.f32 %v529, %v293
        %v531 = vmul.f32 %v529, %v294
        %v532 = vmul.f32 %v529, %v295
        %v536 = vrot.slane %v530, 3
        %v537 = vrot.slane %v531, 3
        %v538 = vsel %vm346, %v536, %v537
        %v539 = vrot.slane %v532, 3
        %v540 = vsel %vm346, %v537, %v539
        %541 = vrot.lane.b32.xlu0 %v538, 126
        %v542 = vpop.permute.xlu0 %541
        %543 = vrot.lane.b32.xlu0 %v540, 126
        %v544 = vpop.permute.xlu0 %543
        %v547 = vadd.f32 %v526, %v542
        %v548 = vadd.f32 %v527, %v544
        %s549 = sld [smem:[#allocation6 + $0x16]]
        %v550 = vstv %s549
        %v551 = vmul.f32 %v550, %v293
        %v552 = vmul.f32 %v550, %v294
        %v553 = vmul.f32 %v550, %v295
        %v557 = vrot.slane %v551, 4
        %v558 = vrot.slane %v552, 4
        %v559 = vsel %vm364, %v557, %v558
        %v560 = vrot.slane %v553, 4
        %v561 = vsel %vm364, %v558, %v560
        %562 = vrot.lane.b32.xlu0 %v559, 126
        %v563 = vpop.permute.xlu0 %562
        %564 = vrot.lane.b32.xlu0 %v561, 126
        %v565 = vpop.permute.xlu0 %564
        %v568 = vadd.f32 %v547, %v563
        %v569 = vadd.f32 %v548, %v565
        %s570 = sld [smem:[#allocation6 + $0x3]]
        %v571 = vstv %s570
        %v572 = vmul.f32 %v571, %v293
        %v573 = vmul.f32 %v571, %v294
        %576 = vrot.lane.b32.xlu0 %v572, 125
        %v577 = vpop.permute.xlu0 %576
        %578 = vrot.lane.b32.xlu0 %v573, 125
        %v579 = vpop.permute.xlu0 %578
        %v582 = vadd.f32 %v568, %v577
        %v583 = vadd.f32 %v569, %v579
        %s584 = sld [smem:[#allocation6 + $0x8]]
        %v585 = vstv %s584
        %v586 = vmul.f32 %v585, %v293
        %v587 = vmul.f32 %v585, %v294
        %v588 = vmul.f32 %v585, %v295
        %v592 = vrot.slane %v586, 1
        %v593 = vrot.slane %v587, 1
        %v594 = vsel %vm310, %v592, %v593
        %v595 = vrot.slane %v588, 1
        %v596 = vsel %vm310, %v593, %v595
        %597 = vrot.lane.b32.xlu0 %v594, 125
        %v598 = vpop.permute.xlu0 %597
        %599 = vrot.lane.b32.xlu0 %v596, 125
        %v600 = vpop.permute.xlu0 %599
        %v603 = vadd.f32 %v582, %v598
        %v604 = vadd.f32 %v583, %v600
        %s605 = sld [smem:[#allocation6 + $0xd]]
        %v606 = vstv %s605
        %v607 = vmul.f32 %v606, %v293
        %v608 = vmul.f32 %v606, %v294
        %v609 = vmul.f32 %v606, %v295
        %v613 = vrot.slane %v607, 2
        %v614 = vrot.slane %v608, 2
        %v615 = vsel %vm328, %v613, %v614
        %v616 = vrot.slane %v609, 2
        %v617 = vsel %vm328, %v614, %v616
        %618 = vrot.lane.b32.xlu0 %v615, 125
        %v619 = vpop.permute.xlu0 %618
        %620 = vrot.lane.b32.xlu0 %v617, 125
        %v621 = vpop.permute.xlu0 %620
        %v624 = vadd.f32 %v603, %v619
        %v625 = vadd.f32 %v604, %v621
        %s626 = sld [smem:[#allocation6 + $0x12]]
        %v627 = vstv %s626
        %v628 = vmul.f32 %v627, %v293
        %v629 = vmul.f32 %v627, %v294
        %v630 = vmul.f32 %v627, %v295
        %v634 = vrot.slane %v628, 3
        %v635 = vrot.slane %v629, 3
        %v636 = vsel %vm346, %v634, %v635
        %v637 = vrot.slane %v630, 3
        %v638 = vsel %vm346, %v635, %v637
        %639 = vrot.lane.b32.xlu0 %v636, 125
        %v640 = vpop.permute.xlu0 %639
        %641 = vrot.lane.b32.xlu0 %v638, 125
        %v642 = vpop.permute.xlu0 %641
        %v645 = vadd.f32 %v624, %v640
        %v646 = vadd.f32 %v625, %v642
        %s647 = sld [smem:[#allocation6 + $0x17]]
        %v648 = vstv %s647
        %v649 = vmul.f32 %v648, %v293
        %v650 = vmul.f32 %v648, %v294
        %v651 = vmul.f32 %v648, %v295
        %v655 = vrot.slane %v649, 4
        %v656 = vrot.slane %v650, 4
        %v657 = vsel %vm364, %v655, %v656
        %v658 = vrot.slane %v651, 4
        %v659 = vsel %vm364, %v656, %v658
        %660 = vrot.lane.b32.xlu0 %v657, 125
        %v661 = vpop.permute.xlu0 %660
        %662 = vrot.lane.b32.xlu0 %v659, 125
        %v663 = vpop.permute.xlu0 %662
        %v666 = vadd.f32 %v645, %v661
        %v667 = vadd.f32 %v646, %v663
        %s668 = sld [smem:[#allocation6 + $0x4]]
        %v669 = vstv %s668
        %v670 = vmul.f32 %v669, %v293
        %v671 = vmul.f32 %v669, %v294
        %674 = vrot.lane.b32.xlu0 %v670, 124
        %v675 = vpop.permute.xlu0 %674
        %676 = vrot.lane.b32.xlu0 %v671, 124
        %v677 = vpop.permute.xlu0 %676
        %v680 = vadd.f32 %v666, %v675
        %v681 = vadd.f32 %v667, %v677
        %s682 = sld [smem:[#allocation6 + $0x9]]
        %v683 = vstv %s682
        %v684 = vmul.f32 %v683, %v293
        %v685 = vmul.f32 %v683, %v294
        %v686 = vmul.f32 %v683, %v295
        %v690 = vrot.slane %v684, 1
        %v691 = vrot.slane %v685, 1
        %v692 = vsel %vm310, %v690, %v691
        %v693 = vrot.slane %v686, 1
        %v694 = vsel %vm310, %v691, %v693
        %695 = vrot.lane.b32.xlu0 %v692, 124
        %v696 = vpop.permute.xlu0 %695
        %697 = vrot.lane.b32.xlu0 %v694, 124
        %v698 = vpop.permute.xlu0 %697
        %v701 = vadd.f32 %v680, %v696
        %v702 = vadd.f32 %v681, %v698
        %s703 = sld [smem:[#allocation6 + $0xe]]
        %v704 = vstv %s703
        %v705 = vmul.f32 %v704, %v293
        %v706 = vmul.f32 %v704, %v294
        %v707 = vmul.f32 %v704, %v295
        %v711 = vrot.slane %v705, 2
        %v712 = vrot.slane %v706, 2
        %v713 = vsel %vm328, %v711, %v712
        %v714 = vrot.slane %v707, 2
        %v715 = vsel %vm328, %v712, %v714
        %716 = vrot.lane.b32.xlu0 %v713, 124
        %v717 = vpop.permute.xlu0 %716
        %718 = vrot.lane.b32.xlu0 %v715, 124
        %v719 = vpop.permute.xlu0 %718
        %v722 = vadd.f32 %v701, %v717
        %v723 = vadd.f32 %v702, %v719
        %s724 = sld [smem:[#allocation6 + $0x13]]
        %v725 = vstv %s724
        %v726 = vmul.f32 %v725, %v293
        %v727 = vmul.f32 %v725, %v294
        %v728 = vmul.f32 %v725, %v295
        %v732 = vrot.slane %v726, 3
        %v733 = vrot.slane %v727, 3
        %v734 = vsel %vm346, %v732, %v733
        %v735 = vrot.slane %v728, 3
        %v736 = vsel %vm346, %v733, %v735
        %737 = vrot.lane.b32.xlu0 %v734, 124
        %v738 = vpop.permute.xlu0 %737
        %739 = vrot.lane.b32.xlu0 %v736, 124
        %v740 = vpop.permute.xlu0 %739
        %v743 = vadd.f32 %v722, %v738
        %v744 = vadd.f32 %v723, %v740
        %s745 = sld [smem:[#allocation6 + $0x18]]
        %v746 = vstv %s745
        %v747 = vmul.f32 %v746, %v293
        %v748 = vmul.f32 %v746, %v294
        %v749 = vmul.f32 %v746, %v295
        %v753 = vrot.slane %v747, 4
        %v754 = vrot.slane %v748, 4
        %v755 = vsel %vm364, %v753, %v754
        %v756 = vrot.slane %v749, 4
        %v757 = vsel %vm364, %v754, %v756
        %758 = vrot.lane.b32.xlu0 %v755, 124
        %v759 = vpop.permute.xlu0 %758
        %760 = vrot.lane.b32.xlu0 %v757, 124
        %v761 = vpop.permute.xlu0 %760
        %v764 = vadd.f32 %v743, %v759
        %v765 = vadd.f32 %v744, %v761
        %v766 = vld [vmem:[%s219] sm:$0xff]
        %v767 = vld [vmem:[%s219 + $0x8] sm:$0xff]
        %v768 = vld [vmem:[%s219 + $0x10] sm:$0xf]
        %s769 = sld [smem:[#allocation6 + $0x19]]
        %v770 = vstv %s769
        %v771 = vmul.f32 %v770, %v766
        %v772 = vmul.f32 %v770, %v767
        %v773 = vadd.f32 %v771, 0.0
        %v774 = vadd.f32 %v772, 0.0
        %s775 = sld [smem:[#allocation6 + $0x1e]]
        %v776 = vstv %s775
        %v777 = vmul.f32 %v776, %v766
        %v778 = vmul.f32 %v776, %v767
        %v779 = vmul.f32 %v776, %v768
        %v783 = vrot.slane %v777, 1
        %v784 = vrot.slane %v778, 1
        %v785 = vsel %vm310, %v783, %v784
        %v786 = vrot.slane %v779, 1
        %v787 = vsel %vm310, %v784, %v786
        %v790 = vadd.f32 %v773, %v785
        %v791 = vadd.f32 %v774, %v787
        %s792 = sld [smem:[#allocation6 + $0x23]]
        %v793 = vstv %s792
        %v794 = vmul.f32 %v793, %v766
        %v795 = vmul.f32 %v793, %v767
        %v796 = vmul.f32 %v793, %v768
        %v800 = vrot.slane %v794, 2
        %v801 = vrot.slane %v795, 2
        %v802 = vsel %vm328, %v800, %v801
        %v803 = vrot.slane %v796, 2
        %v804 = vsel %vm328, %v801, %v803
        %v807 = vadd.f32 %v790, %v802
        %v808 = vadd.f32 %v791, %v804
        %s809 = sld [smem:[#allocation6 + $0x28]]
        %v810 = vstv %s809
        %v811 = vmul.f32 %v810, %v766
        %v812 = vmul.f32 %v810, %v767
        %v813 = vmul.f32 %v810, %v768
        %v817 = vrot.slane %v811, 3
        %v818 = vrot.slane %v812, 3
        %v819 = vsel %vm346, %v817, %v818
        %v820 = vrot.slane %v813, 3
        %v821 = vsel %vm346, %v818, %v820
        %v824 = vadd.f32 %v807, %v819
        %v825 = vadd.f32 %v808, %v821
        %s826 = sld [smem:[#allocation6 + $0x2d]]
        %v827 = vstv %s826
        %v828 = vmul.f32 %v827, %v766
        %v829 = vmul.f32 %v827, %v767
        %v830 = vmul.f32 %v827, %v768
        %v834 = vrot.slane %v828, 4
        %v835 = vrot.slane %v829, 4
        %v836 = vsel %vm364, %v834, %v835
        %v837 = vrot.slane %v830, 4
        %v838 = vsel %vm364, %v835, %v837
        %v841 = vadd.f32 %v824, %v836
        %v842 = vadd.f32 %v825, %v838
        %s843 = sld [smem:[#allocation6 + $0x1a]]
        %v844 = vstv %s843
        %v845 = vmul.f32 %v844, %v766
        %v846 = vmul.f32 %v844, %v767
        %849 = vrot.lane.b32.xlu0 %v845, 127
        %v850 = vpop.permute.xlu0 %849
        %851 = vrot.lane.b32.xlu0 %v846, 127
        %v852 = vpop.permute.xlu0 %851
        %v855 = vadd.f32 %v841, %v850
        %v856 = vadd.f32 %v842, %v852
        %s857 = sld [smem:[#allocation6 + $0x1f]]
        %v858 = vstv %s857
        %v859 = vmul.f32 %v858, %v766
        %v860 = vmul.f32 %v858, %v767
        %v861 = vmul.f32 %v858, %v768
        %v865 = vrot.slane %v859, 1
        %v866 = vrot.slane %v860, 1
        %v867 = vsel %vm310, %v865, %v866
        %v868 = vrot.slane %v861, 1
        %v869 = vsel %vm310, %v866, %v868
        %870 = vrot.lane.b32.xlu0 %v867, 127
        %v871 = vpop.permute.xlu0 %870
        %872 = vrot.lane.b32.xlu0 %v869, 127
        %v873 = vpop.permute.xlu0 %872
        %v876 = vadd.f32 %v855, %v871
        %v877 = vadd.f32 %v856, %v873
        %s878 = sld [smem:[#allocation6 + $0x24]]
        %v879 = vstv %s878
        %v880 = vmul.f32 %v879, %v766
        %v881 = vmul.f32 %v879, %v767
        %v882 = vmul.f32 %v879, %v768
        %v886 = vrot.slane %v880, 2
        %v887 = vrot.slane %v881, 2
        %v888 = vsel %vm328, %v886, %v887
        %v889 = vrot.slane %v882, 2
        %v890 = vsel %vm328, %v887, %v889
        %891 = vrot.lane.b32.xlu0 %v888, 127
        %v892 = vpop.permute.xlu0 %891
        %893 = vrot.lane.b32.xlu0 %v890, 127
        %v894 = vpop.permute.xlu0 %893
        %v897 = vadd.f32 %v876, %v892
        %v898 = vadd.f32 %v877, %v894
        %s899 = sld [smem:[#allocation6 + $0x29]]
        %v900 = vstv %s899
        %v901 = vmul.f32 %v900, %v766
        %v902 = vmul.f32 %v900, %v767
        %v903 = vmul.f32 %v900, %v768
        %v907 = vrot.slane %v901, 3
        %v908 = vrot.slane %v902, 3
        %v909 = vsel %vm346, %v907, %v908
        %v910 = vrot.slane %v903, 3
        %v911 = vsel %vm346, %v908, %v910
        %912 = vrot.lane.b32.xlu0 %v909, 127
        %v913 = vpop.permute.xlu0 %912
        %914 = vrot.lane.b32.xlu0 %v911, 127
        %v915 = vpop.permute.xlu0 %914
        %v918 = vadd.f32 %v897, %v913
        %v919 = vadd.f32 %v898, %v915
        %s920 = sld [smem:[#allocation6 + $0x2e]]
        %v921 = vstv %s920
        %v922 = vmul.f32 %v921, %v766
        %v923 = vmul.f32 %v921, %v767
        %v924 = vmul.f32 %v921, %v768
        %v928 = vrot.slane %v922, 4
        %v929 = vrot.slane %v923, 4
        %v930 = vsel %vm364, %v928, %v929
        %v931 = vrot.slane %v924, 4
        %v932 = vsel %vm364, %v929, %v931
        %933 = vrot.lane.b32.xlu0 %v930, 127
        %v934 = vpop.permute.xlu0 %933
        %935 = vrot.lane.b32.xlu0 %v932, 127
        %v936 = vpop.permute.xlu0 %935
        %v939 = vadd.f32 %v918, %v934
        %v940 = vadd.f32 %v919, %v936
        %s941 = sld [smem:[#allocation6 + $0x1b]]
        %v942 = vstv %s941
        %v943 = vmul.f32 %v942, %v766
        %v944 = vmul.f32 %v942, %v767
        %947 = vrot.lane.b32.xlu0 %v943, 126
        %v948 = vpop.permute.xlu0 %947
        %949 = vrot.lane.b32.xlu0 %v944, 126
        %v950 = vpop.permute.xlu0 %949
        %v953 = vadd.f32 %v939, %v948
        %v954 = vadd.f32 %v940, %v950
        %s955 = sld [smem:[#allocation6 + $0x20]]
        %v956 = vstv %s955
        %v957 = vmul.f32 %v956, %v766
        %v958 = vmul.f32 %v956, %v767
        %v959 = vmul.f32 %v956, %v768
        %v963 = vrot.slane %v957, 1
        %v964 = vrot.slane %v958, 1
        %v965 = vsel %vm310, %v963, %v964
        %v966 = vrot.slane %v959, 1
        %v967 = vsel %vm310, %v964, %v966
        %968 = vrot.lane.b32.xlu0 %v965, 126
        %v969 = vpop.permute.xlu0 %968
        %970 = vrot.lane.b32.xlu0 %v967, 126
        %v971 = vpop.permute.xlu0 %970
        %v974 = vadd.f32 %v953, %v969
        %v975 = vadd.f32 %v954, %v971
        %s976 = sld [smem:[#allocation6 + $0x25]]
        %v977 = vstv %s976
        %v978 = vmul.f32 %v977, %v766
        %v979 = vmul.f32 %v977, %v767
        %v980 = vmul.f32 %v977, %v768
        %v984 = vrot.slane %v978, 2
        %v985 = vrot.slane %v979, 2
        %v986 = vsel %vm328, %v984, %v985
        %v987 = vrot.slane %v980, 2
        %v988 = vsel %vm328, %v985, %v987
        %989 = vrot.lane.b32.xlu0 %v986, 126
        %v990 = vpop.permute.xlu0 %989
        %991 = vrot.lane.b32.xlu0 %v988, 126
        %v992 = vpop.permute.xlu0 %991
        %v995 = vadd.f32 %v974, %v990
        %v996 = vadd.f32 %v975, %v992
        %s997 = sld [smem:[#allocation6 + $0x2a]]
        %v998 = vstv %s997
        %v999 = vmul.f32 %v998, %v766
        %v1000 = vmul.f32 %v998, %v767
        %v1001 = vmul.f32 %v998, %v768
        %v1005 = vrot.slane %v999, 3
        %v1006 = vrot.slane %v1000, 3
        %v1007 = vsel %vm346, %v1005, %v1006
        %v1008 = vrot.slane %v1001, 3
        %v1009 = vsel %vm346, %v1006, %v1008
        %1010 = vrot.lane.b32.xlu0 %v1007, 126
        %v1011 = vpop.permute.xlu0 %1010
        %1012 = vrot.lane.b32.xlu0 %v1009, 126
        %v1013 = vpop.permute.xlu0 %1012
        %v1016 = vadd.f32 %v995, %v1011
        %v1017 = vadd.f32 %v996, %v1013
        %s1018 = sld [smem:[#allocation6 + $0x2f]]
        %v1019 = vstv %s1018
        %v1020 = vmul.f32 %v1019, %v766
        %v1021 = vmul.f32 %v1019, %v767
        %v1022 = vmul.f32 %v1019, %v768
        %v1026 = vrot.slane %v1020, 4
        %v1027 = vrot.slane %v1021, 4
        %v1028 = vsel %vm364, %v1026, %v1027
        %v1029 = vrot.slane %v1022, 4
        %v1030 = vsel %vm364, %v1027, %v1029
        %1031 = vrot.lane.b32.xlu0 %v1028, 126
        %v1032 = vpop.permute.xlu0 %1031
        %1033 = vrot.lane.b32.xlu0 %v1030, 126
        %v1034 = vpop.permute.xlu0 %1033
        %v1037 = vadd.f32 %v1016, %v1032
        %v1038 = vadd.f32 %v1017, %v1034
        %s1039 = sld [smem:[#allocation6 + $0x1c]]
        %v1040 = vstv %s1039
        %v1041 = vmul.f32 %v1040, %v766
        %v1042 = vmul.f32 %v1040, %v767
        %1045 = vrot.lane.b32.xlu0 %v1041, 125
        %v1046 = vpop.permute.xlu0 %1045
        %1047 = vrot.lane.b32.xlu0 %v1042, 125
        %v1048 = vpop.permute.xlu0 %1047
        %v1051 = vadd.f32 %v1037, %v1046
        %v1052 = vadd.f32 %v1038, %v1048
        %s1053 = sld [smem:[#allocation6 + $0x21]]
        %v1054 = vstv %s1053
        %v1055 = vmul.f32 %v1054, %v766
        %v1056 = vmul.f32 %v1054, %v767
        %v1057 = vmul.f32 %v1054, %v768
        %v1061 = vrot.slane %v1055, 1
        %v1062 = vrot.slane %v1056, 1
        %v1063 = vsel %vm310, %v1061, %v1062
        %v1064 = vrot.slane %v1057, 1
        %v1065 = vsel %vm310, %v1062, %v1064
        %1066 = vrot.lane.b32.xlu0 %v1063, 125
        %v1067 = vpop.permute.xlu0 %1066
        %1068 = vrot.lane.b32.xlu0 %v1065, 125
        %v1069 = vpop.permute.xlu0 %1068
        %v1072 = vadd.f32 %v1051, %v1067
        %v1073 = vadd.f32 %v1052, %v1069
        %s1074 = sld [smem:[#allocation6 + $0x26]]
        %v1075 = vstv %s1074
        %v1076 = vmul.f32 %v1075, %v766
        %v1077 = vmul.f32 %v1075, %v767
        %v1078 = vmul.f32 %v1075, %v768
        %v1082 = vrot.slane %v1076, 2
        %v1083 = vrot.slane %v1077, 2
        %v1084 = vsel %vm328, %v1082, %v1083
        %v1085 = vrot.slane %v1078, 2
        %v1086 = vsel %vm328, %v1083, %v1085
        %1087 = vrot.lane.b32.xlu0 %v1084, 125
        %v1088 = vpop.permute.xlu0 %1087
        %1089 = vrot.lane.b32.xlu0 %v1086, 125
        %v1090 = vpop.permute.xlu0 %1089
        %v1093 = vadd.f32 %v1072, %v1088
        %v1094 = vadd.f32 %v1073, %v1090
        %s1095 = sld [smem:[#allocation6 + $0x2b]]
        %v1096 = vstv %s1095
        %v1097 = vmul.f32 %v1096, %v766
        %v1098 = vmul.f32 %v1096, %v767
        %v1099 = vmul.f32 %v1096, %v768
        %v1103 = vrot.slane %v1097, 3
        %v1104 = vrot.slane %v1098, 3
        %v1105 = vsel %vm346, %v1103, %v1104
        %v1106 = vrot.slane %v1099, 3
        %v1107 = vsel %vm346, %v1104, %v1106
        %1108 = vrot.lane.b32.xlu0 %v1105, 125
        %v1109 = vpop.permute.xlu0 %1108
        %1110 = vrot.lane.b32.xlu0 %v1107, 125
        %v1111 = vpop.permute.xlu0 %1110
        %v1114 = vadd.f32 %v1093, %v1109
        %v1115 = vadd.f32 %v1094, %v1111
        %s1116 = sld [smem:[#allocation6 + $0x30]]
        %v1117 = vstv %s1116
        %v1118 = vmul.f32 %v1117, %v766
        %v1119 = vmul.f32 %v1117, %v767
        %v1120 = vmul.f32 %v1117, %v768
        %v1124 = vrot.slane %v1118, 4
        %v1125 = vrot.slane %v1119, 4
        %v1126 = vsel %vm364, %v1124, %v1125
        %v1127 = vrot.slane %v1120, 4
        %v1128 = vsel %vm364, %v1125, %v1127
        %1129 = vrot.lane.b32.xlu0 %v1126, 125
        %v1130 = vpop.permute.xlu0 %1129
        %1131 = vrot.lane.b32.xlu0 %v1128, 125
        %v1132 = vpop.permute.xlu0 %1131
        %v1135 = vadd.f32 %v1114, %v1130
        %v1136 = vadd.f32 %v1115, %v1132
        %s1137 = sld [smem:[#allocation6 + $0x1d]]
        %v1138 = vstv %s1137
        %v1139 = vmul.f32 %v1138, %v766
        %v1140 = vmul.f32 %v1138, %v767
        %1143 = vrot.lane.b32.xlu0 %v1139, 124
        %v1144 = vpop.permute.xlu0 %1143
        %1145 = vrot.lane.b32.xlu0 %v1140, 124
        %v1146 = vpop.permute.xlu0 %1145
        %v1149 = vadd.f32 %v1135, %v1144
        %v1150 = vadd.f32 %v1136, %v1146
        %s1151 = sld [smem:[#allocation6 + $0x22]]
        %v1152 = vstv %s1151
        %v1153 = vmul.f32 %v1152, %v766
        %v1154 = vmul.f32 %v1152, %v767
        %v1155 = vmul.f32 %v1152, %v768
        %v1159 = vrot.slane %v1153, 1
        %v1160 = vrot.slane %v1154, 1
        %v1161 = vsel %vm310, %v1159, %v1160
        %v1162 = vrot.slane %v1155, 1
        %v1163 = vsel %vm310, %v1160, %v1162
        %1164 = vrot.lane.b32.xlu0 %v1161, 124
        %v1165 = vpop.permute.xlu0 %1164
        %1166 = vrot.lane.b32.xlu0 %v1163, 124
        %v1167 = vpop.permute.xlu0 %1166
        %v1170 = vadd.f32 %v1149, %v1165
        %v1171 = vadd.f32 %v1150, %v1167
        %s1172 = sld [smem:[#allocation6 + $0x27]]
        %v1173 = vstv %s1172
        %v1174 = vmul.f32 %v1173, %v766
        %v1175 = vmul.f32 %v1173, %v767
        %v1176 = vmul.f32 %v1173, %v768
        %v1180 = vrot.slane %v1174, 2
        %v1181 = vrot.slane %v1175, 2
        %v1182 = vsel %vm328, %v1180, %v1181
        %v1183 = vrot.slane %v1176, 2
        %v1184 = vsel %vm328, %v1181, %v1183
        %1185 = vrot.lane.b32.xlu0 %v1182, 124
        %v1186 = vpop.permute.xlu0 %1185
        %1187 = vrot.lane.b32.xlu0 %v1184, 124
        %v1188 = vpop.permute.xlu0 %1187
        %v1191 = vadd.f32 %v1170, %v1186
        %v1192 = vadd.f32 %v1171, %v1188
        %s1193 = sld [smem:[#allocation6 + $0x2c]]
        %v1194 = vstv %s1193
        %v1195 = vmul.f32 %v1194, %v766
        %v1196 = vmul.f32 %v1194, %v767
        %v1197 = vmul.f32 %v1194, %v768
        %v1201 = vrot.slane %v1195, 3
        %v1202 = vrot.slane %v1196, 3
        %v1203 = vsel %vm346, %v1201, %v1202
        %v1204 = vrot.slane %v1197, 3
        %v1205 = vsel %vm346, %v1202, %v1204
        %1206 = vrot.lane.b32.xlu0 %v1203, 124
        %v1207 = vpop.permute.xlu0 %1206
        %1208 = vrot.lane.b32.xlu0 %v1205, 124
        %v1209 = vpop.permute.xlu0 %1208
        %v1212 = vadd.f32 %v1191, %v1207
        %v1213 = vadd.f32 %v1192, %v1209
        %s1214 = sld [smem:[#allocation6 + $0x31]]
        %v1215 = vstv %s1214
        %v1216 = vmul.f32 %v1215, %v766
        %v1217 = vmul.f32 %v1215, %v767
        %v1218 = vmul.f32 %v1215, %v768
        %v1222 = vrot.slane %v1216, 4
        %v1223 = vrot.slane %v1217, 4
        %v1224 = vsel %vm364, %v1222, %v1223
        %v1225 = vrot.slane %v1218, 4
        %v1226 = vsel %vm364, %v1223, %v1225
        %1227 = vrot.lane.b32.xlu0 %v1224, 124
        %v1228 = vpop.permute.xlu0 %1227
        %1229 = vrot.lane.b32.xlu0 %v1226, 124
        %v1230 = vpop.permute.xlu0 %1229
        %v1233 = vadd.f32 %v1212, %v1228
        %v1234 = vadd.f32 %v1213, %v1230
        %v1235 = vadd.f32 %v764, %v1233
        %v1236 = vadd.f32 %v765, %v1234
        %s1237 = sld [smem:[#allocation5]]
        %v1238 = vstv %s1237
        %v1239 = vadd.f32 %v1235, %v1238
        %v1240 = vadd.f32 %v1236, %v1238
        %v1241 = vxor.u32 %v1239, 2147483648
        %v1242 = vxor.u32 %v1240, 2147483648
        %v1243 = vmul.f32 %v1241, 1.442695
        %v1244 = vpow.pop %v1243
        %v1245 = vmul.f32 %v1242, 1.442695
        %v1246 = vpow.pop %v1245
        %v1247 = vadd.f32 %v1244, 1.0
        %v1248 = vadd.f32 %v1246, 1.0
        %v1249 = vrcp.pop %v1247
        %v1250 = vmul.f32 %v1247, %v1249
        %v1251 = vsub.f32 1.0, %v1250
        %v1252 = vmul.f32 %v1249, %v1251
        %v1253 = vadd.f32 %v1249, %v1252
        %vm1254 = vweird.f32 %v1247
        %vm1255 = vweird.f32 %v1249
        %vm1256 = vmor %vm1254, %vm1255
        %v1257 = vsel %vm1256, %v1249, %v1253
        %v1258 = vand.u32 2147483647, %v1247
        %vm1259 = vcmp.eq.f32.partialorder %v1258, 8.507059e+37
        %v1260 = vand.u32 %v1247, 2147483648
        %v1261 = vor.u32 1.1754944e-38, %v1260
        %v1262 = vsel %vm1259, %v1261, %v1257
        %v1263 = vmul.f32 1.0, %v1262
        %v1264 = vrcp.pop %v1248
        %v1265 = vmul.f32 %v1248, %v1264
        %v1266 = vsub.f32 1.0, %v1265
        %v1267 = vmul.f32 %v1264, %v1266
        %v1268 = vadd.f32 %v1264, %v1267
        %vm1269 = vweird.f32 %v1248
        %vm1270 = vweird.f32 %v1264
        %vm1271 = vmor %vm1269, %vm1270
        %v1272 = vsel %vm1271, %v1264, %v1268
        %v1273 = vand.u32 2147483647, %v1248
        %vm1274 = vcmp.eq.f32.partialorder %v1273, 8.507059e+37
        %v1275 = vand.u32 %v1248, 2147483648
        %v1276 = vor.u32 1.1754944e-38, %v1275
        %v1277 = vsel %vm1274, %v1276, %v1272
        %v1278 = vmul.f32 1.0, %v1277
        %1279 = vst.msk [vmem:[#allocation2] sm:$0xff] %vm228, %v1263
        %1280 = vst.msk [vmem:[#allocation2 + $0x8] sm:$0xff] %vm228, %v1278
        %v1281 = vld [vmem:[#allocation2] sm:$0xff]
        %v1282 = vld [vmem:[#allocation2 + $0x8] sm:$0xff]
        %v1283 = vld [vmem:[%s181] sm:$0xff]
        %v1284 = vld [vmem:[%s181 + $0x8] sm:$0xff]
        %v1285 = vmul.f32 %v1283, %v1281
        %v1286 = vmul.f32 %v1284, %v1282
        %1287 = vst.msk [vmem:[%s205] sm:$0xff] %vm228, %v1285
        %1288 = vst.msk [vmem:[%s205 + $0x8] sm:$0xff] %vm228, %v1286
        %v1289 = vld [vmem:[%s235] sm:$0xff]
        %v1290 = vld [vmem:[%s235 + $0x8] sm:$0xff]
        %v1291 = vmul.f32 %v1289, %v1281
        %v1292 = vmul.f32 %v1290, %v1282
        %s1293 = scalar_lea.vmem %s205, 16 [#allocation11]
        %1294 = vst.msk [vmem:[%s1293] sm:$0xff] %vm228, %v1291
        %1295 = vst.msk [vmem:[%s1293 + $0x8] sm:$0xff] %vm228, %v1292
        %v1296 = vld [vmem:[%s238] sm:$0xff]
        %v1297 = vld [vmem:[%s238 + $0x8] sm:$0xff]
        %v1298 = vmul.f32 %v1296, %v1281
        %v1299 = vmul.f32 %v1297, %v1282
        %s1300 = scalar_lea.vmem %s205, 32 [#allocation11]
        %1301 = vst.msk [vmem:[%s1300] sm:$0xff] %vm228, %v1298
        %1302 = vst.msk [vmem:[%s1300 + $0x8] sm:$0xff] %vm228, %v1299
        %v1303 = vld [vmem:[%s241] sm:$0xff]
        %v1304 = vld [vmem:[%s241 + $0x8] sm:$0xff]
        %v1305 = vmul.f32 %v1303, %v1281
        %v1306 = vmul.f32 %v1304, %v1282
        %s1307 = scalar_lea.vmem %s205, 48 [#allocation11]
        %1308 = vst.msk [vmem:[%s1307] sm:$0xff] %vm228, %v1305
        %1309 = vst.msk [vmem:[%s1307 + $0x8] sm:$0xff] %vm228, %v1306
        %s1310 = sand.u32 %s98, 1
        %s1311 = scalar_lea.sflag [#allocation8], %s1310
        %s1312 = sand.u32 %s98, 1
        %s1313 = smul.addr %s1312, 64
        %s1314 = scalar_lea.vmem [#allocation11], %s1313
        // Predicated region
        $region41: #{spatial_attention.1} parent=31 // pred_check
          %p1315 = pneg %p108
        $region42: #{spatial_attention.1} parent=31 // pred_check_branch
          %1317 = sbr.rel (%p1315) target = $region44
        $region43: #{spatial_attention.1} parent=31 // pred_region
          %1319 = vsyncadd %s1311, 0
          %s1320 = smul.addr %s22, 8
          %s1321 = smul.addr %s1320, 8
          %s1322 = scalar_lea.hbm %s3, %s1321
          %s1323 = sshll.u32 %s1314, 4
          %s1324 = int_to_ptr.vmem [resolvable:$true] %s1323
          %s1325 = sshll.u32 %s1322, 4
          %s1326 = int_to_ptr.hbm [resolvable:$true] %s1325
          %1331 = dma.vmem_to_hbm [thread:$0]  %s1324, 1024, %s1326, %s1311, 128, 128, 8
        $region44: #{spatial_attention.1} parent=31 // pred_fallthru
          _
      $region32: #{spatial_attention.1} parent=5 // pred_fallthru
        _
      %p1332 = scmp.le.s32.totalorder 2, %s17
      // Predicated region
      $region45: #{spatial_attention.1} parent=5 // pred_check
        %p1333 = pneg %p1332
      $region46: #{spatial_attention.1} parent=5 // pred_check_branch
        %1335 = sbr.rel (%p1333) target = $region48
      $region47: #{spatial_attention.1} parent=5 // pred_region
        %s1336 = ssub.s32 %s17, 2
        // Predicated region
        $region49: #{spatial_attention.1} parent=47 // pred_check
          %p1337 = pneg %p114
        $region50: #{spatial_attention.1} parent=47 // pred_check_branch
          %1339 = sbr.rel (%p1337) target = $region52
        $region51: #{spatial_attention.1} parent=47 // pred_region
          %s1340 = sand.u32 %s99, 1
          %s1341 = scalar_lea.sflag [#allocation8], %s1340
          %s1342 = sand.u32 %s99, 1
          %s1343 = smul.addr %s1342, 64
          %s1344 = scalar_lea.vmem [#allocation11], %s1343
          %1346 = dma.done %s1341, 1024
        $region52: #{spatial_attention.1} parent=47 // pred_fallthru
          _
      $region48: #{spatial_attention.1} parent=5 // pred_fallthru
        _
    $region6: #{spatial_attention.1} parent=1 // loop_footer
      %s21 = sadd.s32 1, %s17
    $region7: #{spatial_attention.1} parent=1 // loop_footer_branch
      %16 = sbr.rel target = $region3
    $region8: #{spatial_attention.1} parent=1 // loop_exit
      _
    %1347 = vsyncpa [#allocation7], 1
    %s1348 = scalar_lea.sflag [#allocation7], 1
    %1349 = vsyncpa %s1348, 1
    %1350 = vsyncpa [#allocation8], 1
    %s1351 = scalar_lea.sflag [#allocation8], 1
    %1352 = vsyncpa %s1351, 1
    %1353 = vsyncpa [#allocation9], 1
    %s1354 = scalar_lea.sflag [#allocation9], 1
    %1355 = vsyncpa %s1354, 1

</llo_original>
